<compile_context>
chip_gen: v6e
topology: v6e:2x2x1
jax: 0.10.0
libtpu: 0.0.40
codegen_flags: <defaults>
</compile_context>

<pallas_src>
import functools

import jax
import jax.numpy as jnp
from jax import lax
from jax.experimental import pallas as pl
from jax.experimental.pallas import tpu as pltpu

LANE = 128


def _round_up(x, m):
    return (x + m - 1) // m * m


PARAM_ORDER = (
    "wq", "bq", "wk", "bk", "wv", "bv",
    "wo", "bo", "ln1_g", "ln1_b",
    "w1", "b1", "w2", "b2", "ln2_g", "ln2_b",
)


# ---------------------------------------------------------------------------
# Fused kernel: one grid step == one encoder layer applied to one batch row.
# ---------------------------------------------------------------------------
def fused_encoder_kernel(
    x_ref,
    wq_ref, bq_ref, wk_ref, bk_ref, wv_ref, bv_ref,
    wo_ref, bo_ref, ln1g_ref, ln1b_ref,
    w1_ref, b1_ref, w2_ref, b2_ref, ln2g_ref, ln2b_ref,
    out_ref,
    h_ref, attn_ref,
    *, num_heads, dim_k, dim_v, dim_model, dim_model_pad,
):
    f32 = jnp.float32
    bf16 = jnp.bfloat16
    layer = pl.program_id(1)

    # First layer for this batch row: load the (padded) input activation into
    # the VMEM-resident carry.  Later layers read the carry directly.
    @pl.when(layer == 0)
    def _():
        h_ref[...] = x_ref[0]

    x = h_ref[...]                                  # (S, Dp) f32, pad lanes == 0

    if dim_model_pad != dim_model:
        col = lax.broadcasted_iota(jnp.int32, x.shape, 1)
        valid = col < dim_model
    else:
        valid = None

    inv_dm = 1.0 / dim_model

    def layer_norm(r, g, b):
        # mean/var over the true dim_model lanes only (pad lanes carry zeros).
        mu = jnp.sum(r, axis=-1, keepdims=True) * inv_dm
        diff = r - mu
        if valid is not None:
            diff = jnp.where(valid, diff, 0.0)
        var = jnp.sum(diff * diff, axis=-1, keepdims=True) * inv_dm
        return diff * lax.rsqrt(var + 1e-5) * g + b

    xb = x.astype(bf16)

    # Packed (all heads) Q/K/V projections: one MXU matmul each, f32 accumulate.
    q = jnp.dot(xb, wq_ref[0], preferred_element_type=f32) + bq_ref[0]
    k = jnp.dot(xb, wk_ref[0], preferred_element_type=f32) + bk_ref[0]
    v = jnp.dot(xb, wv_ref[0], preferred_element_type=f32) + bv_ref[0]

    q = q * (1.0 / (dim_k ** 0.5))                  # fold softmax 1/scale into Q

    qb = q.astype(bf16)
    kb = k.astype(bf16)
    vb = v.astype(bf16)

    # Per-head scaled-dot-product attention.  No transpose (dot_general
    # contracts the last dims) and no concatenate (head outputs are written
    # into the pre-allocated VMEM scratch laid out (S, H*dv)).
    for h in range(num_heads):
        qh = qb[:, h * dim_k:(h + 1) * dim_k]
        kh = kb[:, h * dim_k:(h + 1) * dim_k]
        vh = vb[:, h * dim_v:(h + 1) * dim_v]
        s = lax.dot_general(qh, kh, (((1,), (1,)), ((), ())),
                            preferred_element_type=f32)          # (S, S)
        m = jnp.max(s, axis=-1, keepdims=True)
        e = jnp.exp(s - m)
        p = e * pl.reciprocal(jnp.sum(e, axis=-1, keepdims=True), approx=True)
        o = jnp.dot(p.astype(bf16), vh, preferred_element_type=f32)
        attn_ref[:, h * dim_v:(h + 1) * dim_v] = o.astype(bf16)

    # Packed output projection over all heads.
    mha = jnp.dot(attn_ref[...], wo_ref[0], preferred_element_type=f32) + bo_ref[0]

    # Residual + LayerNorm 1 (dropout == identity in eval mode).
    y1 = layer_norm(x + mha, ln1g_ref[0], ln1b_ref[0])

    # Feed-forward: Linear -> ReLU -> Linear (bf16 MXU inputs, f32 accumulate).
    hid = jnp.dot(y1.astype(bf16), w1_ref[0], preferred_element_type=f32) + b1_ref[0]
    hid = jnp.maximum(hid, 0.0)
    ff = jnp.dot(hid.astype(bf16), w2_ref[0], preferred_element_type=f32) + b2_ref[0]

    # Residual + LayerNorm 2.
    y2 = layer_norm(y1 + ff, ln2g_ref[0], ln2b_ref[0])

    h_ref[...] = y2        # carry to next layer (stays in VMEM)
    out_ref[0] = y2        # only the last layer's value is flushed to HBM


# ---------------------------------------------------------------------------
# Wrapper: pad to lane-dense shapes, stack per-layer weights, single pallas_call.
# ---------------------------------------------------------------------------
def transformer_encoder(x, layer_params, *, num_heads, dim_k, dim_v):
    """x: (B, S, dim_model) f32 -> (B, S, dim_model) f32."""
    B, S, D = x.shape
    L = len(layer_params)
    Hdk = num_heads * dim_k
    Hdv = num_heads * dim_v
    F = layer_params[0]["w1"].shape[1]
    Dp = _round_up(D, LANE)
    Fp = _round_up(F, LANE)
    f32, bf16 = jnp.float32, jnp.bfloat16

    def pad2(a, rows, cols):
        out = jnp.zeros((rows, cols), a.dtype)
        return out.at[:a.shape[0], :a.shape[1]].set(a)

    def stack(name, rows, cols, dtype):
        return jnp.stack([pad2(p[name], rows, cols)
                          for p in layer_params]).astype(dtype)

    # Matmul weights stored in bf16 (halves HBM traffic, bf16 MXU rate);
    # biases / LayerNorm params stay f32.  Padded rows/cols are zero so the
    # math on the true dim_model / dim_ff slices is exact.
    packed = {
        "wq": stack("wq", D, Hdk, bf16)if False else stack("wq", Dp, Hdk, bf16),
        "bq": stack("bq", 1, Hdk, f32),
        "wk": stack("wk", Dp, Hdk, bf16),
        "bk": stack("bk", 1, Hdk, f32),
        "wv": stack("wv", Dp, Hdv, bf16),
        "bv": stack("bv", 1, Hdv, f32),
        "wo": stack("wo", Hdv, Dp, bf16),
        "bo": stack("bo", 1, Dp, f32),
        "ln1_g": stack("ln1_g", 1, Dp, f32),
        "ln1_b": stack("ln1_b", 1, Dp, f32),
        "w1": stack("w1", Dp, Fp, bf16),
        "b1": stack("b1", 1, Fp, f32),
        "w2": stack("w2", Fp, Dp, bf16),
        "b2": stack("b2", 1, Dp, f32),
        "ln2_g": stack("ln2_g", 1, Dp, f32),
        "ln2_b": stack("ln2_b", 1, Dp, f32),
    }

    x_pad = jnp.zeros((B, S, Dp), f32).at[:, :, :D].set(x)

    wmap = lambda b, l: (l, 0, 0)
    in_specs = [pl.BlockSpec((1, S, Dp), lambda b, l: (b, 0, 0))]
    args = [x_pad]
    for name in PARAM_ORDER:
        arr = packed[name]
        args.append(arr)
        in_specs.append(pl.BlockSpec((1,) + arr.shape[1:], wmap))

    kernel = functools.partial(
        fused_encoder_kernel,
        num_heads=num_heads, dim_k=dim_k, dim_v=dim_v,
        dim_model=D, dim_model_pad=Dp,
    )

    out = pl.pallas_call(
        kernel,
        out_shape=jax.ShapeDtypeStruct((B, S, Dp), f32),
        grid_spec=pltpu.PrefetchScalarGridSpec(
            num_scalar_prefetch=0,
            grid=(B, L),                       # batch parallel, layers sequential
            in_specs=in_specs,
            out_specs=pl.BlockSpec((1, S, Dp), lambda b, l: (b, 0, 0)),
            scratch_shapes=[
                pltpu.VMEM((S, Dp), f32),      # activation carried across layers
                pltpu.VMEM((S, Hdv), bf16),    # packed multi-head attn output
            ],
        ),
        compiler_params=pltpu.CompilerParams(
            dimension_semantics=("parallel", "arbitrary"),
        ),
    )(*args)
    return out[:, :, :D]


# ---------------------------------------------------------------------------
# Deterministic parameter initialization (synthetic weights, no checkpoint).
# ---------------------------------------------------------------------------
def init_linear(key, fan_in, fan_out):
    kw, kb = jax.random.split(key)
    bound = 1.0 / (fan_in ** 0.5)
    w = jax.random.uniform(kw, (fan_in, fan_out), jnp.float32, -bound, bound)
    b = jax.random.uniform(kb, (1, fan_out), jnp.float32, -bound, bound)
    return w, b


def init_layer_params(key, dim_model, num_heads, dim_k, dim_v, dim_ff):
    ks = jax.random.split(key, 6)
    wq, bq = init_linear(ks[0], dim_model, num_heads * dim_k)
    wk, bk = init_linear(ks[1], dim_model, num_heads * dim_k)
    wv, bv = init_linear(ks[2], dim_model, num_heads * dim_v)
    wo, bo = init_linear(ks[3], num_heads * dim_v, dim_model)
    w1, b1 = init_linear(ks[4], dim_model, dim_ff)
    w2, b2 = init_linear(ks[5], dim_ff, dim_model)
    ones = jnp.ones((1, dim_model), jnp.float32)
    zeros = jnp.zeros((1, dim_model), jnp.float32)
    return dict(
        wq=wq, bq=bq, wk=wk, bk=bk, wv=wv, bv=bv,
        wo=wo, bo=bo, ln1_g=ones, ln1_b=zeros,
        w1=w1, b1=b1, w2=w2, b2=b2, ln2_g=ones, ln2_b=zeros,
    )


# ---------------------------------------------------------------------------
# Pure-JAX f32 reference (mirrors the PyTorch forward in eval mode).
# ---------------------------------------------------------------------------
def ref_layer(x, p, num_heads, dim_k, dim_v):
    B, S, D = x.shape
    q = x @ p["wq"] + p["bq"][0]
    k = x @ p["wk"] + p["bk"][0]
    v = x @ p["wv"] + p["bv"][0]

    def split(t, d):
        return t.reshape(B, S, num_heads, d).transpose(0, 2, 1, 3)

    qh, kh, vh = split(q, dim_k), split(k, dim_k), split(v, dim_v)
    s = jnp.einsum("bhqd,bhkd->bhqk", qh, kh) / (dim_k ** 0.5)
    attn = jax.nn.softmax(s, axis=-1)
    o = jnp.einsum("bhqk,bhkd->bhqd", attn, vh)
    concat = o.transpose(0, 2, 1, 3).reshape(B, S, num_heads * dim_v)
    mha = concat @ p["wo"] + p["bo"][0]

    def ln(t, g, b):
        mu = t.mean(-1, keepdims=True)
        var = ((t - mu) ** 2).mean(-1, keepdims=True)
        return (t - mu) / jnp.sqrt(var + 1e-5) * g[0] + b[0]

    y1 = ln(x + mha, p["ln1_g"], p["ln1_b"])
    ff = jnp.maximum(y1 @ p["w1"] + p["b1"][0], 0.0) @ p["w2"] + p["b2"][0]
    return ln(y1 + ff, p["ln2_g"], p["ln2_b"])


def ref_encoder(x, layer_params, num_heads, dim_k, dim_v):
    for p in layer_params:
        x = ref_layer(x, p, num_heads, dim_k, dim_v)
    return x


if __name__ == "__main__":
    B, S = 2, 8
    NUM_LAYERS = 2
    DIM_MODEL = 32
    NUM_HEADS = 4
    DIM_FF = 64
    DIM_K = DIM_V = DIM_MODEL // NUM_HEADS

    root = jax.random.PRNGKey(0)
    k_x, k_params = jax.random.split(root)
    x = jax.random.normal(k_x, (B, S, DIM_MODEL), jnp.float32)

    layer_keys = jax.random.split(k_params, NUM_LAYERS)
    layer_params = [
        init_layer_params(k, DIM_MODEL, NUM_HEADS, DIM_K, DIM_V, DIM_FF)
        for k in layer_keys
    ]

    out = transformer_encoder(
        x, layer_params, num_heads=NUM_HEADS, dim_k=DIM_K, dim_v=DIM_V
    )
    out = jax.block_until_ready(out)

    ref = ref_encoder(x, layer_params, NUM_HEADS, DIM_K, DIM_V)
    assert out.shape == (B, S, DIM_MODEL)
    # bf16 matmul inputs + approximate reciprocal -> relaxed tolerance vs f32 ref.
    max_diff = jnp.max(jnp.abs(out - ref))
    assert jnp.allclose(out, ref, atol=5e-2, rtol=5e-2), (
        f"mismatch vs JAX reference, max abs diff {max_diff}")
    print("KERNEL_OK")
</pallas_src>

<mosaic_0001>
module attributes {stable_mosaic.version = 11 : i64} {
  func.func @fused_encoder_kernel(%arg0: i32, %arg1: i32, %arg2: memref<1x8x128xf32, #tpu.memory_space<vmem>>, %arg3: memref<1x128x32xbf16, #tpu.memory_space<vmem>>, %arg4: memref<1x1x32xf32, #tpu.memory_space<vmem>>, %arg5: memref<1x128x32xbf16, #tpu.memory_space<vmem>>, %arg6: memref<1x1x32xf32, #tpu.memory_space<vmem>>, %arg7: memref<1x128x32xbf16, #tpu.memory_space<vmem>>, %arg8: memref<1x1x32xf32, #tpu.memory_space<vmem>>, %arg9: memref<1x32x128xbf16, #tpu.memory_space<vmem>>, %arg10: memref<1x1x128xf32, #tpu.memory_space<vmem>>, %arg11: memref<1x1x128xf32, #tpu.memory_space<vmem>>, %arg12: memref<1x1x128xf32, #tpu.memory_space<vmem>>, %arg13: memref<1x128x128xbf16, #tpu.memory_space<vmem>>, %arg14: memref<1x1x128xf32, #tpu.memory_space<vmem>>, %arg15: memref<1x128x128xbf16, #tpu.memory_space<vmem>>, %arg16: memref<1x1x128xf32, #tpu.memory_space<vmem>>, %arg17: memref<1x1x128xf32, #tpu.memory_space<vmem>>, %arg18: memref<1x1x128xf32, #tpu.memory_space<vmem>>, %arg19: memref<1x8x128xf32, #tpu.memory_space<vmem>>, %arg20: memref<8x128xf32, #tpu.memory_space<vmem>>, %arg21: memref<8x32xbf16, #tpu.memory_space<vmem>>) attributes {dimension_semantics = [#tpu.dimension_semantics<parallel>, #tpu.dimension_semantics<arbitrary>], iteration_bounds = array<i64: 2, 2>, scalar_prefetch = 0 : i64, scratch_operands = 2 : i64, tpu.core_type = #tpu.core_type<tc>, window_params = [{transform_indices = @transform_0, window_bounds = array<i64: 1, 8, 128>}, {transform_indices = @transform_1, window_bounds = array<i64: 1, 128, 32>}, {transform_indices = @transform_2, window_bounds = array<i64: 1, 1, 32>}, {transform_indices = @transform_3, window_bounds = array<i64: 1, 128, 32>}, {transform_indices = @transform_4, window_bounds = array<i64: 1, 1, 32>}, {transform_indices = @transform_5, window_bounds = array<i64: 1, 128, 32>}, {transform_indices = @transform_6, window_bounds = array<i64: 1, 1, 32>}, {transform_indices = @transform_7, window_bounds = array<i64: 1, 32, 128>}, {transform_indices = @transform_8, window_bounds = array<i64: 1, 1, 128>}, {transform_indices = @transform_9, window_bounds = array<i64: 1, 1, 128>}, {transform_indices = @transform_10, window_bounds = array<i64: 1, 1, 128>}, {transform_indices = @transform_11, window_bounds = array<i64: 1, 128, 128>}, {transform_indices = @transform_12, window_bounds = array<i64: 1, 1, 128>}, {transform_indices = @transform_13, window_bounds = array<i64: 1, 128, 128>}, {transform_indices = @transform_14, window_bounds = array<i64: 1, 1, 128>}, {transform_indices = @transform_15, window_bounds = array<i64: 1, 1, 128>}, {transform_indices = @transform_16, window_bounds = array<i64: 1, 1, 128>}, {transform_indices = @transform_17, window_bounds = array<i64: 1, 8, 128>}]} {
    %c0_i32 = arith.constant 0 : i32
    %0 = arith.cmpi eq, %arg1, %c0_i32 : i32
    %1 = arith.extui %0 : i1 to i32
    %c0_i32_0 = arith.constant 0 : i32
    %2 = arith.cmpi ne, %1, %c0_i32_0 : i32
    scf.if %2 {
      %c0_97 = arith.constant 0 : index
      %c0_98 = arith.constant 0 : index
      %c0_99 = arith.constant 0 : index
      %190 = vector.load %arg2[%c0_97, %c0_98, %c0_99] : memref<1x8x128xf32, #tpu.memory_space<vmem>>, vector<1x8x128xf32>
      %191 = vector.shape_cast %190 : vector<1x8x128xf32> to vector<8x128xf32>
      %c0_100 = arith.constant 0 : index
      %c0_101 = arith.constant 0 : index
      %192 = vector.load %arg20[%c0_100, %c0_101] : memref<8x128xf32, #tpu.memory_space<vmem>>, vector<8x128xf32>
      tpu.vector_store %arg20[%c0_100, %c0_101], %191 {strides = array<i32>} : memref<8x128xf32, #tpu.memory_space<vmem>>, vector<8x128xf32>,
    } else {
    }
    %c0 = arith.constant 0 : index
    %c0_1 = arith.constant 0 : index
    %3 = vector.load %arg20[%c0, %c0_1] : memref<8x128xf32, #tpu.memory_space<vmem>>, vector<8x128xf32>
    %4 = tpu.iota {dimensions = array<i32: 1>} : vector<8x128xi32>
    %c32_i32 = arith.constant 32 : i32
    %5 = vector.broadcast %c32_i32 : i32 to vector<8x128xi32>
    %6 = arith.cmpi slt, %4, %5 : vector<8x128xi32>
    %7 = arith.truncf %3 : vector<8x128xf32> to vector<8x128xbf16>
    %c0_2 = arith.constant 0 : index
    %c0_3 = arith.constant 0 : index
    %c0_4 = arith.constant 0 : index
    %8 = vector.load %arg3[%c0_2, %c0_3, %c0_4] : memref<1x128x32xbf16, #tpu.memory_space<vmem>>, vector<1x128x32xbf16>
    %9 = vector.shape_cast %8 : vector<1x128x32xbf16> to vector<128x32xbf16>
    %cst = arith.constant dense<0.000000e+00> : vector<8x32xf32>
    %10 = tpu.matmul %7, %9, %cst {dimension_numbers = #tpu.dot_dimension_numbers<[1], [0], [0], [1], [0, 0, 1, 1], [], []>} : vector<8x128xbf16>, vector<128x32xbf16>, vector<8x32xf32> -> vector<8x32xf32>
    %c0_5 = arith.constant 0 : index
    %c0_6 = arith.constant 0 : index
    %c0_7 = arith.constant 0 : index
    %11 = vector.load %arg4[%c0_5, %c0_6, %c0_7] : memref<1x1x32xf32, #tpu.memory_space<vmem>>, vector<1x1x32xf32>
    %12 = vector.shape_cast %11 : vector<1x1x32xf32> to vector<1x32xf32>
    %13 = vector.broadcast %12 : vector<1x32xf32> to vector<8x32xf32>
    %14 = arith.addf %10, %13 : vector<8x32xf32>
    %c0_8 = arith.constant 0 : index
    %c0_9 = arith.constant 0 : index
    %c0_10 = arith.constant 0 : index
    %15 = vector.load %arg5[%c0_8, %c0_9, %c0_10] : memref<1x128x32xbf16, #tpu.memory_space<vmem>>, vector<1x128x32xbf16>
    %16 = vector.shape_cast %15 : vector<1x128x32xbf16> to vector<128x32xbf16>
    %cst_11 = arith.constant dense<0.000000e+00> : vector<8x32xf32>
    %17 = tpu.matmul %7, %16, %cst_11 {dimension_numbers = #tpu.dot_dimension_numbers<[1], [0], [0], [1], [0, 0, 1, 1], [], []>} : vector<8x128xbf16>, vector<128x32xbf16>, vector<8x32xf32> -> vector<8x32xf32>
    %c0_12 = arith.constant 0 : index
    %c0_13 = arith.constant 0 : index
    %c0_14 = arith.constant 0 : index
    %18 = vector.load %arg6[%c0_12, %c0_13, %c0_14] : memref<1x1x32xf32, #tpu.memory_space<vmem>>, vector<1x1x32xf32>
    %19 = vector.shape_cast %18 : vector<1x1x32xf32> to vector<1x32xf32>
    %20 = vector.broadcast %19 : vector<1x32xf32> to vector<8x32xf32>
    %21 = arith.addf %17, %20 : vector<8x32xf32>
    %c0_15 = arith.constant 0 : index
    %c0_16 = arith.constant 0 : index
    %c0_17 = arith.constant 0 : index
    %22 = vector.load %arg7[%c0_15, %c0_16, %c0_17] : memref<1x128x32xbf16, #tpu.memory_space<vmem>>, vector<1x128x32xbf16>
    %23 = vector.shape_cast %22 : vector<1x128x32xbf16> to vector<128x32xbf16>
    %cst_18 = arith.constant dense<0.000000e+00> : vector<8x32xf32>
    %24 = tpu.matmul %7, %23, %cst_18 {dimension_numbers = #tpu.dot_dimension_numbers<[1], [0], [0], [1], [0, 0, 1, 1], [], []>} : vector<8x128xbf16>, vector<128x32xbf16>, vector<8x32xf32> -> vector<8x32xf32>
    %c0_19 = arith.constant 0 : index
    %c0_20 = arith.constant 0 : index
    %c0_21 = arith.constant 0 : index
    %25 = vector.load %arg8[%c0_19, %c0_20, %c0_21] : memref<1x1x32xf32, #tpu.memory_space<vmem>>, vector<1x1x32xf32>
    %26 = vector.shape_cast %25 : vector<1x1x32xf32> to vector<1x32xf32>
    %27 = vector.broadcast %26 : vector<1x32xf32> to vector<8x32xf32>
    %28 = arith.addf %24, %27 : vector<8x32xf32>
    %cst_22 = arith.constant 0.353553385 : f32
    %29 = vector.broadcast %cst_22 : f32 to vector<8x32xf32>
    %30 = arith.mulf %14, %29 : vector<8x32xf32>
    %31 = arith.truncf %30 : vector<8x32xf32> to vector<8x32xbf16>
    %32 = arith.truncf %21 : vector<8x32xf32> to vector<8x32xbf16>
    %33 = arith.truncf %28 : vector<8x32xf32> to vector<8x32xbf16>
    %34 = vector.extract_strided_slice %31 {offsets = [0, 0], sizes = [8, 8], strides = [1, 1]} : vector<8x32xbf16> to vector<8x8xbf16>
    %35 = vector.extract_strided_slice %32 {offsets = [0, 0], sizes = [8, 8], strides = [1, 1]} : vector<8x32xbf16> to vector<8x8xbf16>
    %36 = vector.extract_strided_slice %33 {offsets = [0, 0], sizes = [8, 8], strides = [1, 1]} : vector<8x32xbf16> to vector<8x8xbf16>
    %cst_23 = arith.constant dense<0.000000e+00> : vector<8x8xf32>
    %37 = tpu.matmul %34, %35, %cst_23 {dimension_numbers = #tpu.dot_dimension_numbers<[1], [1], [0], [0], [0, 0, 1, 0], [], []>} : vector<8x8xbf16>, vector<8x8xbf16>, vector<8x8xf32> -> vector<8x8xf32>
    %cst_24 = arith.constant dense<0xFF800000> : vector<8xf32>
    %38 = vector.multi_reduction <maximumf>, %37, %cst_24 [1] : vector<8x8xf32> to vector<8xf32>
    %39 = vector.shape_cast %38 : vector<8xf32> to vector<8x1xf32>
    %40 = vector.broadcast %39 : vector<8x1xf32> to vector<8x8xf32>
    %41 = arith.subf %37, %40 : vector<8x8xf32>
    %42 = math.exp %41 : vector<8x8xf32>
    %cst_25 = arith.constant dense<0.000000e+00> : vector<8xf32>
    %43 = vector.multi_reduction <add>, %42, %cst_25 [1] : vector<8x8xf32> to vector<8xf32>
    %44 = vector.shape_cast %43 : vector<8xf32> to vector<8x1xf32>
    %45 = tpu.reciprocal %44 {approx = true} : vector<8x1xf32> -> vector<8x1xf32>
    %46 = vector.broadcast %45 : vector<8x1xf32> to vector<8x8xf32>
    %47 = arith.mulf %42, %46 : vector<8x8xf32>
    %48 = arith.truncf %47 : vector<8x8xf32> to vector<8x8xbf16>
    %cst_26 = arith.constant dense<0.000000e+00> : vector<8x8xf32>
    %49 = tpu.matmul %48, %36, %cst_26 {dimension_numbers = #tpu.dot_dimension_numbers<[1], [0], [0], [1], [0, 0, 1, 1], [], []>} : vector<8x8xbf16>, vector<8x8xbf16>, vector<8x8xf32> -> vector<8x8xf32>
    %50 = arith.truncf %49 : vector<8x8xf32> to vector<8x8xbf16>
    %c0_27 = arith.constant 0 : index
    %c0_28 = arith.constant 0 : index
    %51 = vector.load %arg21[%c0_27, %c0_28] : memref<8x32xbf16, #tpu.memory_space<vmem>>, vector<8x8xbf16>
    tpu.vector_store %arg21[%c0_27, %c0_28], %50 {strides = array<i32>} : memref<8x32xbf16, #tpu.memory_space<vmem>>, vector<8x8xbf16>,
    %52 = vector.extract_strided_slice %31 {offsets = [0, 8], sizes = [8, 8], strides = [1, 1]} : vector<8x32xbf16> to vector<8x8xbf16>
    %53 = vector.extract_strided_slice %32 {offsets = [0, 8], sizes = [8, 8], strides = [1, 1]} : vector<8x32xbf16> to vector<8x8xbf16>
    %54 = vector.extract_strided_slice %33 {offsets = [0, 8], sizes = [8, 8], strides = [1, 1]} : vector<8x32xbf16> to vector<8x8xbf16>
    %cst_29 = arith.constant dense<0.000000e+00> : vector<8x8xf32>
    %55 = tpu.matmul %52, %53, %cst_29 {dimension_numbers = #tpu.dot_dimension_numbers<[1], [1], [0], [0], [0, 0, 1, 0], [], []>} : vector<8x8xbf16>, vector<8x8xbf16>, vector<8x8xf32> -> vector<8x8xf32>
    %cst_30 = arith.constant dense<0xFF800000> : vector<8xf32>
    %56 = vector.multi_reduction <maximumf>, %55, %cst_30 [1] : vector<8x8xf32> to vector<8xf32>
    %57 = vector.shape_cast %56 : vector<8xf32> to vector<8x1xf32>
    %58 = vector.broadcast %57 : vector<8x1xf32> to vector<8x8xf32>
    %59 = arith.subf %55, %58 : vector<8x8xf32>
    %60 = math.exp %59 : vector<8x8xf32>
    %cst_31 = arith.constant dense<0.000000e+00> : vector<8xf32>
    %61 = vector.multi_reduction <add>, %60, %cst_31 [1] : vector<8x8xf32> to vector<8xf32>
    %62 = vector.shape_cast %61 : vector<8xf32> to vector<8x1xf32>
    %63 = tpu.reciprocal %62 {approx = true} : vector<8x1xf32> -> vector<8x1xf32>
    %64 = vector.broadcast %63 : vector<8x1xf32> to vector<8x8xf32>
    %65 = arith.mulf %60, %64 : vector<8x8xf32>
    %66 = arith.truncf %65 : vector<8x8xf32> to vector<8x8xbf16>
    %cst_32 = arith.constant dense<0.000000e+00> : vector<8x8xf32>
    %67 = tpu.matmul %66, %54, %cst_32 {dimension_numbers = #tpu.dot_dimension_numbers<[1], [0], [0], [1], [0, 0, 1, 1], [], []>} : vector<8x8xbf16>, vector<8x8xbf16>, vector<8x8xf32> -> vector<8x8xf32>
    %68 = arith.truncf %67 : vector<8x8xf32> to vector<8x8xbf16>
    %c0_33 = arith.constant 0 : index
    %c8 = arith.constant 8 : index
    %69 = vector.load %arg21[%c0_33, %c8] : memref<8x32xbf16, #tpu.memory_space<vmem>>, vector<8x8xbf16>
    tpu.vector_store %arg21[%c0_33, %c8], %68 {strides = array<i32>} : memref<8x32xbf16, #tpu.memory_space<vmem>>, vector<8x8xbf16>,
    %70 = vector.extract_strided_slice %31 {offsets = [0, 16], sizes = [8, 8], strides = [1, 1]} : vector<8x32xbf16> to vector<8x8xbf16>
    %71 = vector.extract_strided_slice %32 {offsets = [0, 16], sizes = [8, 8], strides = [1, 1]} : vector<8x32xbf16> to vector<8x8xbf16>
    %72 = vector.extract_strided_slice %33 {offsets = [0, 16], sizes = [8, 8], strides = [1, 1]} : vector<8x32xbf16> to vector<8x8xbf16>
    %cst_34 = arith.constant dense<0.000000e+00> : vector<8x8xf32>
    %73 = tpu.matmul %70, %71, %cst_34 {dimension_numbers = #tpu.dot_dimension_numbers<[1], [1], [0], [0], [0, 0, 1, 0], [], []>} : vector<8x8xbf16>, vector<8x8xbf16>, vector<8x8xf32> -> vector<8x8xf32>
    %cst_35 = arith.constant dense<0xFF800000> : vector<8xf32>
    %74 = vector.multi_reduction <maximumf>, %73, %cst_35 [1] : vector<8x8xf32> to vector<8xf32>
    %75 = vector.shape_cast %74 : vector<8xf32> to vector<8x1xf32>
    %76 = vector.broadcast %75 : vector<8x1xf32> to vector<8x8xf32>
    %77 = arith.subf %73, %76 : vector<8x8xf32>
    %78 = math.exp %77 : vector<8x8xf32>
    %cst_36 = arith.constant dense<0.000000e+00> : vector<8xf32>
    %79 = vector.multi_reduction <add>, %78, %cst_36 [1] : vector<8x8xf32> to vector<8xf32>
    %80 = vector.shape_cast %79 : vector<8xf32> to vector<8x1xf32>
    %81 = tpu.reciprocal %80 {approx = true} : vector<8x1xf32> -> vector<8x1xf32>
    %82 = vector.broadcast %81 : vector<8x1xf32> to vector<8x8xf32>
    %83 = arith.mulf %78, %82 : vector<8x8xf32>
    %84 = arith.truncf %83 : vector<8x8xf32> to vector<8x8xbf16>
    %cst_37 = arith.constant dense<0.000000e+00> : vector<8x8xf32>
    %85 = tpu.matmul %84, %72, %cst_37 {dimension_numbers = #tpu.dot_dimension_numbers<[1], [0], [0], [1], [0, 0, 1, 1], [], []>} : vector<8x8xbf16>, vector<8x8xbf16>, vector<8x8xf32> -> vector<8x8xf32>
    %86 = arith.truncf %85 : vector<8x8xf32> to vector<8x8xbf16>
    %c0_38 = arith.constant 0 : index
    %c16 = arith.constant 16 : index
    %87 = vector.load %arg21[%c0_38, %c16] : memref<8x32xbf16, #tpu.memory_space<vmem>>, vector<8x8xbf16>
    tpu.vector_store %arg21[%c0_38, %c16], %86 {strides = array<i32>} : memref<8x32xbf16, #tpu.memory_space<vmem>>, vector<8x8xbf16>,
    %88 = vector.extract_strided_slice %31 {offsets = [0, 24], sizes = [8, 8], strides = [1, 1]} : vector<8x32xbf16> to vector<8x8xbf16>
    %89 = vector.extract_strided_slice %32 {offsets = [0, 24], sizes = [8, 8], strides = [1, 1]} : vector<8x32xbf16> to vector<8x8xbf16>
    %90 = vector.extract_strided_slice %33 {offsets = [0, 24], sizes = [8, 8], strides = [1, 1]} : vector<8x32xbf16> to vector<8x8xbf16>
    %cst_39 = arith.constant dense<0.000000e+00> : vector<8x8xf32>
    %91 = tpu.matmul %88, %89, %cst_39 {dimension_numbers = #tpu.dot_dimension_numbers<[1], [1], [0], [0], [0, 0, 1, 0], [], []>} : vector<8x8xbf16>, vector<8x8xbf16>, vector<8x8xf32> -> vector<8x8xf32>
    %cst_40 = arith.constant dense<0xFF800000> : vector<8xf32>
    %92 = vector.multi_reduction <maximumf>, %91, %cst_40 [1] : vector<8x8xf32> to vector<8xf32>
    %93 = vector.shape_cast %92 : vector<8xf32> to vector<8x1xf32>
    %94 = vector.broadcast %93 : vector<8x1xf32> to vector<8x8xf32>
    %95 = arith.subf %91, %94 : vector<8x8xf32>
    %96 = math.exp %95 : vector<8x8xf32>
    %cst_41 = arith.constant dense<0.000000e+00> : vector<8xf32>
    %97 = vector.multi_reduction <add>, %96, %cst_41 [1] : vector<8x8xf32> to vector<8xf32>
    %98 = vector.shape_cast %97 : vector<8xf32> to vector<8x1xf32>
    %99 = tpu.reciprocal %98 {approx = true} : vector<8x1xf32> -> vector<8x1xf32>
    %100 = vector.broadcast %99 : vector<8x1xf32> to vector<8x8xf32>
    %101 = arith.mulf %96, %100 : vector<8x8xf32>
    %102 = arith.truncf %101 : vector<8x8xf32> to vector<8x8xbf16>
    %cst_42 = arith.constant dense<0.000000e+00> : vector<8x8xf32>
    %103 = tpu.matmul %102, %90, %cst_42 {dimension_numbers = #tpu.dot_dimension_numbers<[1], [0], [0], [1], [0, 0, 1, 1], [], []>} : vector<8x8xbf16>, vector<8x8xbf16>, vector<8x8xf32> -> vector<8x8xf32>
    %104 = arith.truncf %103 : vector<8x8xf32> to vector<8x8xbf16>
    %c0_43 = arith.constant 0 : index
    %c24 = arith.constant 24 : index
    %105 = vector.load %arg21[%c0_43, %c24] : memref<8x32xbf16, #tpu.memory_space<vmem>>, vector<8x8xbf16>
    tpu.vector_store %arg21[%c0_43, %c24], %104 {strides = array<i32>} : memref<8x32xbf16, #tpu.memory_space<vmem>>, vector<8x8xbf16>,
    %c0_44 = arith.constant 0 : index
    %c0_45 = arith.constant 0 : index
    %106 = vector.load %arg21[%c0_44, %c0_45] : memref<8x32xbf16, #tpu.memory_space<vmem>>, vector<8x32xbf16>
    %c0_46 = arith.constant 0 : index
    %c0_47 = arith.constant 0 : index
    %c0_48 = arith.constant 0 : index
    %107 = vector.load %arg9[%c0_46, %c0_47, %c0_48] : memref<1x32x128xbf16, #tpu.memory_space<vmem>>, vector<1x32x128xbf16>
    %108 = vector.shape_cast %107 : vector<1x32x128xbf16> to vector<32x128xbf16>
    %cst_49 = arith.constant dense<0.000000e+00> : vector<8x128xf32>
    %109 = tpu.matmul %106, %108, %cst_49 {dimension_numbers = #tpu.dot_dimension_numbers<[1], [0], [0], [1], [0, 0, 1, 1], [], []>} : vector<8x32xbf16>, vector<32x128xbf16>, vector<8x128xf32> -> vector<8x128xf32>
    %c0_50 = arith.constant 0 : index
    %c0_51 = arith.constant 0 : index
    %c0_52 = arith.constant 0 : index
    %110 = vector.load %arg10[%c0_50, %c0_51, %c0_52] : memref<1x1x128xf32, #tpu.memory_space<vmem>>, vector<1x1x128xf32>
    %111 = vector.shape_cast %110 : vector<1x1x128xf32> to vector<1x128xf32>
    %112 = vector.broadcast %111 : vector<1x128xf32> to vector<8x128xf32>
    %113 = arith.addf %109, %112 : vector<8x128xf32>
    %114 = arith.addf %3, %113 : vector<8x128xf32>
    %c0_53 = arith.constant 0 : index
    %c0_54 = arith.constant 0 : index
    %c0_55 = arith.constant 0 : index
    %115 = vector.load %arg11[%c0_53, %c0_54, %c0_55] : memref<1x1x128xf32, #tpu.memory_space<vmem>>, vector<1x1x128xf32>
    %116 = vector.shape_cast %115 : vector<1x1x128xf32> to vector<1x128xf32>
    %c0_56 = arith.constant 0 : index
    %c0_57 = arith.constant 0 : index
    %c0_58 = arith.constant 0 : index
    %117 = vector.load %arg12[%c0_56, %c0_57, %c0_58] : memref<1x1x128xf32, #tpu.memory_space<vmem>>, vector<1x1x128xf32>
    %118 = vector.shape_cast %117 : vector<1x1x128xf32> to vector<1x128xf32>
    %cst_59 = arith.constant dense<0.000000e+00> : vector<8xf32>
    %119 = vector.multi_reduction <add>, %114, %cst_59 [1] : vector<8x128xf32> to vector<8xf32>
    %120 = vector.shape_cast %119 : vector<8xf32> to vector<8x1xf32>
    %cst_60 = arith.constant 3.125000e-02 : f32
    %121 = vector.broadcast %cst_60 : f32 to vector<8x1xf32>
    %122 = arith.mulf %120, %121 : vector<8x1xf32>
    %123 = vector.broadcast %122 : vector<8x1xf32> to vector<8x128xf32>
    %124 = arith.subf %114, %123 : vector<8x128xf32>
    %cst_61 = arith.constant 0.000000e+00 : f32
    %125 = vector.broadcast %cst_61 : f32 to vector<8x128xf32>
    %126 = arith.select %6, %124, %125 : vector<8x128xi1>, vector<8x128xf32>
    %127 = arith.mulf %126, %126 : vector<8x128xf32>
    %cst_62 = arith.constant dense<0.000000e+00> : vector<8xf32>
    %128 = vector.multi_reduction <add>, %127, %cst_62 [1] : vector<8x128xf32> to vector<8xf32>
    %129 = vector.shape_cast %128 : vector<8xf32> to vector<8x1xf32>
    %cst_63 = arith.constant 3.125000e-02 : f32
    %130 = vector.broadcast %cst_63 : f32 to vector<8x1xf32>
    %131 = arith.mulf %129, %130 : vector<8x1xf32>
    %cst_64 = arith.constant 9.99999974E-6 : f32
    %132 = vector.broadcast %cst_64 : f32 to vector<8x1xf32>
    %133 = arith.addf %131, %132 : vector<8x1xf32>
    %134 = math.rsqrt %133 : vector<8x1xf32>
    %135 = vector.broadcast %134 : vector<8x1xf32> to vector<8x128xf32>
    %136 = arith.mulf %126, %135 : vector<8x128xf32>
    %137 = vector.broadcast %116 : vector<1x128xf32> to vector<8x128xf32>
    %138 = arith.mulf %136, %137 : vector<8x128xf32>
    %139 = vector.broadcast %118 : vector<1x128xf32> to vector<8x128xf32>
    %140 = arith.addf %138, %139 : vector<8x128xf32>
    %141 = arith.truncf %140 : vector<8x128xf32> to vector<8x128xbf16>
    %c0_65 = arith.constant 0 : index
    %c0_66 = arith.constant 0 : index
    %c0_67 = arith.constant 0 : index
    %142 = vector.load %arg13[%c0_65, %c0_66, %c0_67] : memref<1x128x128xbf16, #tpu.memory_space<vmem>>, vector<1x128x128xbf16>
    %143 = vector.shape_cast %142 : vector<1x128x128xbf16> to vector<128x128xbf16>
    %cst_68 = arith.constant dense<0.000000e+00> : vector<8x128xf32>
    %144 = tpu.matmul %141, %143, %cst_68 {dimension_numbers = #tpu.dot_dimension_numbers<[1], [0], [0], [1], [0, 0, 1, 1], [], []>} : vector<8x128xbf16>, vector<128x128xbf16>, vector<8x128xf32> -> vector<8x128xf32>
    %c0_69 = arith.constant 0 : index
    %c0_70 = arith.constant 0 : index
    %c0_71 = arith.constant 0 : index
    %145 = vector.load %arg14[%c0_69, %c0_70, %c0_71] : memref<1x1x128xf32, #tpu.memory_space<vmem>>, vector<1x1x128xf32>
    %146 = vector.shape_cast %145 : vector<1x1x128xf32> to vector<1x128xf32>
    %147 = vector.broadcast %146 : vector<1x128xf32> to vector<8x128xf32>
    %148 = arith.addf %144, %147 : vector<8x128xf32>
    %cst_72 = arith.constant 0.000000e+00 : f32
    %149 = vector.broadcast %cst_72 : f32 to vector<8x128xf32>
    %150 = arith.maximumf %148, %149 : vector<8x128xf32>
    %151 = arith.truncf %150 : vector<8x128xf32> to vector<8x128xbf16>
    %c0_73 = arith.constant 0 : index
    %c0_74 = arith.constant 0 : index
    %c0_75 = arith.constant 0 : index
    %152 = vector.load %arg15[%c0_73, %c0_74, %c0_75] : memref<1x128x128xbf16, #tpu.memory_space<vmem>>, vector<1x128x128xbf16>
    %153 = vector.shape_cast %152 : vector<1x128x128xbf16> to vector<128x128xbf16>
    %cst_76 = arith.constant dense<0.000000e+00> : vector<8x128xf32>
    %154 = tpu.matmul %151, %153, %cst_76 {dimension_numbers = #tpu.dot_dimension_numbers<[1], [0], [0], [1], [0, 0, 1, 1], [], []>} : vector<8x128xbf16>, vector<128x128xbf16>, vector<8x128xf32> -> vector<8x128xf32>
    %c0_77 = arith.constant 0 : index
    %c0_78 = arith.constant 0 : index
    %c0_79 = arith.constant 0 : index
    %155 = vector.load %arg16[%c0_77, %c0_78, %c0_79] : memref<1x1x128xf32, #tpu.memory_space<vmem>>, vector<1x1x128xf32>
    %156 = vector.shape_cast %155 : vector<1x1x128xf32> to vector<1x128xf32>
    %157 = vector.broadcast %156 : vector<1x128xf32> to vector<8x128xf32>
    %158 = arith.addf %154, %157 : vector<8x128xf32>
    %159 = arith.addf %140, %158 : vector<8x128xf32>
    %c0_80 = arith.constant 0 : index
    %c0_81 = arith.constant 0 : index
    %c0_82 = arith.constant 0 : index
    %160 = vector.load %arg17[%c0_80, %c0_81, %c0_82] : memref<1x1x128xf32, #tpu.memory_space<vmem>>, vector<1x1x128xf32>
    %161 = vector.shape_cast %160 : vector<1x1x128xf32> to vector<1x128xf32>
    %c0_83 = arith.constant 0 : index
    %c0_84 = arith.constant 0 : index
    %c0_85 = arith.constant 0 : index
    %162 = vector.load %arg18[%c0_83, %c0_84, %c0_85] : memref<1x1x128xf32, #tpu.memory_space<vmem>>, vector<1x1x128xf32>
    %163 = vector.shape_cast %162 : vector<1x1x128xf32> to vector<1x128xf32>
    %cst_86 = arith.constant dense<0.000000e+00> : vector<8xf32>
    %164 = vector.multi_reduction <add>, %159, %cst_86 [1] : vector<8x128xf32> to vector<8xf32>
    %165 = vector.shape_cast %164 : vector<8xf32> to vector<8x1xf32>
    %cst_87 = arith.constant 3.125000e-02 : f32
    %166 = vector.broadcast %cst_87 : f32 to vector<8x1xf32>
    %167 = arith.mulf %165, %166 : vector<8x1xf32>
    %168 = vector.broadcast %167 : vector<8x1xf32> to vector<8x128xf32>
    %169 = arith.subf %159, %168 : vector<8x128xf32>
    %cst_88 = arith.constant 0.000000e+00 : f32
    %170 = vector.broadcast %cst_88 : f32 to vector<8x128xf32>
    %171 = arith.select %6, %169, %170 : vector<8x128xi1>, vector<8x128xf32>
    %172 = arith.mulf %171, %171 : vector<8x128xf32>
    %cst_89 = arith.constant dense<0.000000e+00> : vector<8xf32>
    %173 = vector.multi_reduction <add>, %172, %cst_89 [1] : vector<8x128xf32> to vector<8xf32>
    %174 = vector.shape_cast %173 : vector<8xf32> to vector<8x1xf32>
    %cst_90 = arith.constant 3.125000e-02 : f32
    %175 = vector.broadcast %cst_90 : f32 to vector<8x1xf32>
    %176 = arith.mulf %174, %175 : vector<8x1xf32>
    %cst_91 = arith.constant 9.99999974E-6 : f32
    %177 = vector.broadcast %cst_91 : f32 to vector<8x1xf32>
    %178 = arith.addf %176, %177 : vector<8x1xf32>
    %179 = math.rsqrt %178 : vector<8x1xf32>
    %180 = vector.broadcast %179 : vector<8x1xf32> to vector<8x128xf32>
    %181 = arith.mulf %171, %180 : vector<8x128xf32>
    %182 = vector.broadcast %161 : vector<1x128xf32> to vector<8x128xf32>
    %183 = arith.mulf %181, %182 : vector<8x128xf32>
    %184 = vector.broadcast %163 : vector<1x128xf32> to vector<8x128xf32>
    %185 = arith.addf %183, %184 : vector<8x128xf32>
    %c0_92 = arith.constant 0 : index
    %c0_93 = arith.constant 0 : index
    %186 = vector.load %arg20[%c0_92, %c0_93] : memref<8x128xf32, #tpu.memory_space<vmem>>, vector<8x128xf32>
    tpu.vector_store %arg20[%c0_92, %c0_93], %185 {strides = array<i32>} : memref<8x128xf32, #tpu.memory_space<vmem>>, vector<8x128xf32>,
    %c0_94 = arith.constant 0 : index
    %c0_95 = arith.constant 0 : index
    %c0_96 = arith.constant 0 : index
    %187 = vector.load %arg19[%c0_94, %c0_95, %c0_96] : memref<1x8x128xf32, #tpu.memory_space<vmem>>, vector<1x8x128xf32>
    %188 = vector.shape_cast %187 : vector<1x8x128xf32> to vector<8x128xf32>
    %189 = vector.shape_cast %185 : vector<8x128xf32> to vector<1x8x128xf32>
    tpu.vector_store %arg19[%c0_94, %c0_95, %c0_96], %189 {strides = array<i32>} : memref<1x8x128xf32, #tpu.memory_space<vmem>>, vector<1x8x128xf32>,
    return
  }
  func.func @transform_0(%arg0: i32, %arg1: i32) -> (i32, i32, i32) {
    %c0_i32 = arith.constant 0 : i32
    %c0_i32_0 = arith.constant 0 : i32
    %c0_i32_1 = arith.constant 0 : i32
    return %arg0, %c0_i32, %c0_i32_0 : i32, i32, i32
  }
  func.func @transform_1(%arg0: i32, %arg1: i32) -> (i32, i32, i32) {
    %c0_i32 = arith.constant 0 : i32
    %c0_i32_0 = arith.constant 0 : i32
    %c0_i32_1 = arith.constant 0 : i32
    return %arg1, %c0_i32, %c0_i32_0 : i32, i32, i32
  }
  func.func @transform_2(%arg0: i32, %arg1: i32) -> (i32, i32, i32) {
    %c0_i32 = arith.constant 0 : i32
    %c0_i32_0 = arith.constant 0 : i32
    %c0_i32_1 = arith.constant 0 : i32
    return %arg1, %c0_i32, %c0_i32_0 : i32, i32, i32
  }
  func.func @transform_3(%arg0: i32, %arg1: i32) -> (i32, i32, i32) {
    %c0_i32 = arith.constant 0 : i32
    %c0_i32_0 = arith.constant 0 : i32
    %c0_i32_1 = arith.constant 0 : i32
    return %arg1, %c0_i32, %c0_i32_0 : i32, i32, i32
  }
  func.func @transform_4(%arg0: i32, %arg1: i32) -> (i32, i32, i32) {
    %c0_i32 = arith.constant 0 : i32
    %c0_i32_0 = arith.constant 0 : i32
    %c0_i32_1 = arith.constant 0 : i32
    return %arg1, %c0_i32, %c0_i32_0 : i32, i32, i32
  }
  func.func @transform_5(%arg0: i32, %arg1: i32) -> (i32, i32, i32) {
    %c0_i32 = arith.constant 0 : i32
    %c0_i32_0 = arith.constant 0 : i32
    %c0_i32_1 = arith.constant 0 : i32
    return %arg1, %c0_i32, %c0_i32_0 : i32, i32, i32
  }
  func.func @transform_6(%arg0: i32, %arg1: i32) -> (i32, i32, i32) {
    %c0_i32 = arith.constant 0 : i32
    %c0_i32_0 = arith.constant 0 : i32
    %c0_i32_1 = arith.constant 0 : i32
    return %arg1, %c0_i32, %c0_i32_0 : i32, i32, i32
  }
  func.func @transform_7(%arg0: i32, %arg1: i32) -> (i32, i32, i32) {
    %c0_i32 = arith.constant 0 : i32
    %c0_i32_0 = arith.constant 0 : i32
    %c0_i32_1 = arith.constant 0 : i32
    return %arg1, %c0_i32, %c0_i32_0 : i32, i32, i32
  }
  func.func @transform_8(%arg0: i32, %arg1: i32) -> (i32, i32, i32) {
    %c0_i32 = arith.constant 0 : i32
    %c0_i32_0 = arith.constant 0 : i32
    %c0_i32_1 = arith.constant 0 : i32
    return %arg1, %c0_i32, %c0_i32_0 : i32, i32, i32
  }
  func.func @transform_9(%arg0: i32, %arg1: i32) -> (i32, i32, i32) {
    %c0_i32 = arith.constant 0 : i32
    %c0_i32_0 = arith.constant 0 : i32
    %c0_i32_1 = arith.constant 0 : i32
    return %arg1, %c0_i32, %c0_i32_0 : i32, i32, i32
  }
  func.func @transform_10(%arg0: i32, %arg1: i32) -> (i32, i32, i32) {
    %c0_i32 = arith.constant 0 : i32
    %c0_i32_0 = arith.constant 0 : i32
    %c0_i32_1 = arith.constant 0 : i32
    return %arg1, %c0_i32, %c0_i32_0 : i32, i32, i32
  }
  func.func @transform_11(%arg0: i32, %arg1: i32) -> (i32, i32, i32) {
    %c0_i32 = arith.constant 0 : i32
    %c0_i32_0 = arith.constant 0 : i32
    %c0_i32_1 = arith.constant 0 : i32
    return %arg1, %c0_i32, %c0_i32_0 : i32, i32, i32
  }
  func.func @transform_12(%arg0: i32, %arg1: i32) -> (i32, i32, i32) {
    %c0_i32 = arith.constant 0 : i32
    %c0_i32_0 = arith.constant 0 : i32
    %c0_i32_1 = arith.constant 0 : i32
    return %arg1, %c0_i32, %c0_i32_0 : i32, i32, i32
  }
  func.func @transform_13(%arg0: i32, %arg1: i32) -> (i32, i32, i32) {
    %c0_i32 = arith.constant 0 : i32
    %c0_i32_0 = arith.constant 0 : i32
    %c0_i32_1 = arith.constant 0 : i32
    return %arg1, %c0_i32, %c0_i32_0 : i32, i32, i32
  }
  func.func @transform_14(%arg0: i32, %arg1: i32) -> (i32, i32, i32) {
    %c0_i32 = arith.constant 0 : i32
    %c0_i32_0 = arith.constant 0 : i32
    %c0_i32_1 = arith.constant 0 : i32
    return %arg1, %c0_i32, %c0_i32_0 : i32, i32, i32
  }
  func.func @transform_15(%arg0: i32, %arg1: i32) -> (i32, i32, i32) {
    %c0_i32 = arith.constant 0 : i32
    %c0_i32_0 = arith.constant 0 : i32
    %c0_i32_1 = arith.constant 0 : i32
    return %arg1, %c0_i32, %c0_i32_0 : i32, i32, i32
  }
  func.func @transform_16(%arg0: i32, %arg1: i32) -> (i32, i32, i32) {
    %c0_i32 = arith.constant 0 : i32
    %c0_i32_0 = arith.constant 0 : i32
    %c0_i32_1 = arith.constant 0 : i32
    return %arg1, %c0_i32, %c0_i32_0 : i32, i32, i32
  }
  func.func @transform_17(%arg0: i32, %arg1: i32) -> (i32, i32, i32) {
    %c0_i32 = arith.constant 0 : i32
    %c0_i32_0 = arith.constant 0 : i32
    %c0_i32_1 = arith.constant 0 : i32
    return %arg0, %c0_i32, %c0_i32_0 : i32, i32, i32
  }
}

</mosaic_0001>

<llo_original>
// kernel: tpu_custom_call.1
$region0: #{tpu_custom_call.1}
  #allocation0 [shape = 'u32[]', space=smem, size = 0x4, offset = 0x4, fixed_abs, tag = 'smem constant byte address 0x4 - core index']
  #allocation1 [shape = 'u32[144,128]{1,0:T(1,128)}', space=vmem, size = 0x12000, scoped, tag = 'internal scratch']
  #allocation2 [shape = 'f32[8,128]{1,0:T(8,128)}', space=vmem, size = 0x1000, scoped, tag = 'scratch operand']
  #allocation3 [shape = 'bf16[8,32]{1,0:T(8,128)(2,1)}', space=vmem, size = 0x800, scoped, tag = 'scratch operand']
  %s0 = inlined_call_operand.vmem [shape: f32[2,8,128], index: 0, kind: input, shape index: {}]
  %s1 = inlined_call_operand.vmem [shape: bf16[2,128,32], index: 1, kind: input, shape index: {}]
  %s2 = inlined_call_operand.vmem [shape: f32[2,1,32], index: 2, kind: input, shape index: {}]
  %s3 = inlined_call_operand.vmem [shape: bf16[2,128,32], index: 3, kind: input, shape index: {}]
  %s4 = inlined_call_operand.vmem [shape: f32[2,1,32], index: 4, kind: input, shape index: {}]
  %s5 = inlined_call_operand.vmem [shape: bf16[2,128,32], index: 5, kind: input, shape index: {}]
  %s6 = inlined_call_operand.vmem [shape: f32[2,1,32], index: 6, kind: input, shape index: {}]
  %s7 = inlined_call_operand.vmem [shape: bf16[2,32,128], index: 7, kind: input, shape index: {}]
  %s8 = inlined_call_operand.vmem [shape: f32[2,1,128], index: 8, kind: input, shape index: {}]
  %s9 = inlined_call_operand.vmem [shape: f32[2,1,128], index: 9, kind: input, shape index: {}]
  %s10 = inlined_call_operand.vmem [shape: f32[2,1,128], index: 10, kind: input, shape index: {}]
  %s11 = inlined_call_operand.vmem [shape: bf16[2,128,128], index: 11, kind: input, shape index: {}]
  %s12 = inlined_call_operand.vmem [shape: f32[2,1,128], index: 12, kind: input, shape index: {}]
  %s13 = inlined_call_operand.vmem [shape: bf16[2,128,128], index: 13, kind: input, shape index: {}]
  %s14 = inlined_call_operand.vmem [shape: f32[2,1,128], index: 14, kind: input, shape index: {}]
  %s15 = inlined_call_operand.vmem [shape: f32[2,1,128], index: 15, kind: input, shape index: {}]
  %s16 = inlined_call_operand.vmem [shape: f32[2,1,128], index: 16, kind: input, shape index: {}]
  %s17 = inlined_call_operand.hbm [shape: f32[2,8,128], index: 17, kind: output, shape index: {}]
  %s18 = sld [smem:[#allocation0]]
  $region105: #{tpu_custom_call.1} parent=0
    _
  %s20 = ssub.s32 1, %s18
  %s21 = scalar_select 0, %s20, %s18
  $region1: #{tpu_custom_call.1} parent=0
    #allocation4 [shape = 'u8[8192]{0}', space=vmem, size = 0x2000, scoped, tag = 'output window, operand 0']
    #allocation5 [shape = 's32[2]{0}', space=sflag, size = 0x8, scoped, tag = 'scoped memory for tpu_custom_call.1']
    %22 = vsyncpa [#allocation5], 0
    %s23 = scalar_lea.sflag [#allocation5], 1
    %24 = vsyncpa %s23, 0
    loop: start=0, step=1, limit=6
    $region2: #{tpu_custom_call.1} parent=1 // loop_pre_header
      _
    $region3: #{tpu_custom_call.1} parent=1 // loop_header
      %s26 = sphi 0, %s30
      %p27 = scmp.ge.s32.totalorder %s26, 6
      %s33 = sphi 0, %s45
      %s34 = sphi 0, %s41
      %s35 = sphi 0, %s33
      %s36 = sphi 0, %s34
      %s37 = sphi 0, %s35
      %s38 = sphi 0, %s36
      %s48 = sphi 0, %s50
      %s51 = sphi 0, %s48
      %s52 = sphi 0, %s51
      %s68 = sphi 0, %s52
      %s74 = sphi 0, %s76
      %s77 = sphi 0, %s74
      %s78 = sphi 0, %s77
      %s94 = sphi 0, %s78
      %s100 = sphi 0, %s102
      %s103 = sphi 0, %s100
      %s104 = sphi 0, %s103
      %s120 = sphi 0, %s104
      %s126 = sphi 0, %s128
      %s129 = sphi 0, %s126
      %s130 = sphi 0, %s129
      %s146 = sphi 0, %s130
      %s152 = sphi 0, %s154
      %s155 = sphi 0, %s152
      %s156 = sphi 0, %s155
      %s172 = sphi 0, %s156
      %s178 = sphi 0, %s180
      %s181 = sphi 0, %s178
      %s182 = sphi 0, %s181
      %s198 = sphi 0, %s182
      %s204 = sphi 0, %s206
      %s207 = sphi 0, %s204
      %s208 = sphi 0, %s207
      %s224 = sphi 0, %s208
      %s230 = sphi 0, %s232
      %s233 = sphi 0, %s230
      %s234 = sphi 0, %s233
      %s250 = sphi 0, %s234
      %s256 = sphi 0, %s258
      %s259 = sphi 0, %s256
      %s260 = sphi 0, %s259
      %s276 = sphi 0, %s260
      %s282 = sphi 0, %s284
      %s285 = sphi 0, %s282
      %s286 = sphi 0, %s285
      %s302 = sphi 0, %s286
      %s308 = sphi 0, %s310
      %s311 = sphi 0, %s308
      %s312 = sphi 0, %s311
      %s328 = sphi 0, %s312
      %s334 = sphi 0, %s336
      %s337 = sphi 0, %s334
      %s338 = sphi 0, %s337
      %s354 = sphi 0, %s338
      %s360 = sphi 0, %s362
      %s363 = sphi 0, %s360
      %s364 = sphi 0, %s363
      %s380 = sphi 0, %s364
      %s386 = sphi 0, %s388
      %s389 = sphi 0, %s386
      %s390 = sphi 0, %s389
      %s406 = sphi 0, %s390
      %s412 = sphi 0, %s414
      %s415 = sphi 0, %s412
      %s416 = sphi 0, %s415
      %s432 = sphi 0, %s416
      %s438 = sphi 0, %s440
      %s441 = sphi 0, %s438
      %s442 = sphi 0, %s441
      %s458 = sphi 0, %s442
      %s464 = sphi 0, %s466
      %s467 = sphi 0, %s464
      %s468 = sphi 0, %s467
      %s484 = sphi 0, %s468
      %s490 = sphi 0, %s492
      %s493 = sphi 0, %s490
      %s494 = sphi 0, %s493
      %s510 = sphi 0, %s494
    $region4: #{tpu_custom_call.1} parent=1 // loop_header_branch
      %29 = sbr.rel (%p27) target = $region8
    $region5: #{tpu_custom_call.1} parent=1 // loop_body
      %s31 = ssub.s32 %s26, 1
      %s32 = ssub.s32 %s26, 2
      %s39 = sadd.s32 1, %s34
      %p40 = scmp.ge.s32.totalorder %s39, 2
      %s41 = scalar_select %p40, 0, %s39
      %s42 = sadd.s32 1, %s33
      %s43 = scalar_select %p40, %s42, %s33
      %p44 = scmp.ge.s32.totalorder %s43, 2
      %s45 = scalar_select %p44, 0, %s43
      %s46 = ssub.s32 %s33, %s45
      %p47 = scmp.eq.s32.totalorder %s46, 0
      %s49 = sadd.s32 %s48, 1
      %s50 = scalar_select %p47, %s48, %s49
      %p53 = pneg %p47
      %p54 = scmp.eq.s32.totalorder %s26, 3
      %p55 = por %p53, %p54
      %p56 = scmp.ne.s32.totalorder %s48, %s51
      %p57 = scmp.eq.s32.totalorder %s26, 0
      %p58 = por %p56, %p57
      %p59 = scmp.ne.s32.totalorder %s48, %s51
      %p60 = scmp.eq.s32.totalorder %s31, 3
      %p61 = por %p59, %p60
      %p62 = scmp.ne.s32.totalorder %s51, %s52
      %p63 = scmp.eq.s32.totalorder %s31, 0
      %p64 = por %p62, %p63
      %p65 = scmp.ne.s32.totalorder %s51, %s52
      %p66 = scmp.eq.s32.totalorder %s32, 3
      %p67 = por %p65, %p66
      %p69 = scmp.ne.s32.totalorder %s52, %s68
      %p70 = scmp.eq.s32.totalorder %s32, 0
      %p71 = por %p69, %p70
      %s72 = ssub.s32 %s34, %s41
      %p73 = scmp.eq.s32.totalorder %s72, 0
      %s75 = sadd.s32 %s74, 1
      %s76 = scalar_select %p73, %s74, %s75
      %p79 = pneg %p73
      %p80 = scmp.eq.s32.totalorder %s26, 3
      %p81 = por %p79, %p80
      %p82 = scmp.ne.s32.totalorder %s74, %s77
      %p83 = scmp.eq.s32.totalorder %s26, 0
      %p84 = por %p82, %p83
      %p85 = scmp.ne.s32.totalorder %s74, %s77
      %p86 = scmp.eq.s32.totalorder %s31, 3
      %p87 = por %p85, %p86
      %p88 = scmp.ne.s32.totalorder %s77, %s78
      %p89 = scmp.eq.s32.totalorder %s31, 0
      %p90 = por %p88, %p89
      %p91 = scmp.ne.s32.totalorder %s77, %s78
      %p92 = scmp.eq.s32.totalorder %s32, 3
      %p93 = por %p91, %p92
      %p95 = scmp.ne.s32.totalorder %s78, %s94
      %p96 = scmp.eq.s32.totalorder %s32, 0
      %p97 = por %p95, %p96
      %s98 = ssub.s32 %s34, %s41
      %p99 = scmp.eq.s32.totalorder %s98, 0
      %s101 = sadd.s32 %s100, 1
      %s102 = scalar_select %p99, %s100, %s101
      %p105 = pneg %p99
      %p106 = scmp.eq.s32.totalorder %s26, 3
      %p107 = por %p105, %p106
      %p108 = scmp.ne.s32.totalorder %s100, %s103
      %p109 = scmp.eq.s32.totalorder %s26, 0
      %p110 = por %p108, %p109
      %p111 = scmp.ne.s32.totalorder %s100, %s103
      %p112 = scmp.eq.s32.totalorder %s31, 3
      %p113 = por %p111, %p112
      %p114 = scmp.ne.s32.totalorder %s103, %s104
      %p115 = scmp.eq.s32.totalorder %s31, 0
      %p116 = por %p114, %p115
      %p117 = scmp.ne.s32.totalorder %s103, %s104
      %p118 = scmp.eq.s32.totalorder %s32, 3
      %p119 = por %p117, %p118
      %p121 = scmp.ne.s32.totalorder %s104, %s120
      %p122 = scmp.eq.s32.totalorder %s32, 0
      %p123 = por %p121, %p122
      %s124 = ssub.s32 %s34, %s41
      %p125 = scmp.eq.s32.totalorder %s124, 0
      %s127 = sadd.s32 %s126, 1
      %s128 = scalar_select %p125, %s126, %s127
      %p131 = pneg %p125
      %p132 = scmp.eq.s32.totalorder %s26, 3
      %p133 = por %p131, %p132
      %p134 = scmp.ne.s32.totalorder %s126, %s129
      %p135 = scmp.eq.s32.totalorder %s26, 0
      %p136 = por %p134, %p135
      %p137 = scmp.ne.s32.totalorder %s126, %s129
      %p138 = scmp.eq.s32.totalorder %s31, 3
      %p139 = por %p137, %p138
      %p140 = scmp.ne.s32.totalorder %s129, %s130
      %p141 = scmp.eq.s32.totalorder %s31, 0
      %p142 = por %p140, %p141
      %p143 = scmp.ne.s32.totalorder %s129, %s130
      %p144 = scmp.eq.s32.totalorder %s32, 3
      %p145 = por %p143, %p144
      %p147 = scmp.ne.s32.totalorder %s130, %s146
      %p148 = scmp.eq.s32.totalorder %s32, 0
      %p149 = por %p147, %p148
      %s150 = ssub.s32 %s34, %s41
      %p151 = scmp.eq.s32.totalorder %s150, 0
      %s153 = sadd.s32 %s152, 1
      %s154 = scalar_select %p151, %s152, %s153
      %p157 = pneg %p151
      %p158 = scmp.eq.s32.totalorder %s26, 3
      %p159 = por %p157, %p158
      %p160 = scmp.ne.s32.totalorder %s152, %s155
      %p161 = scmp.eq.s32.totalorder %s26, 0
      %p162 = por %p160, %p161
      %p163 = scmp.ne.s32.totalorder %s152, %s155
      %p164 = scmp.eq.s32.totalorder %s31, 3
      %p165 = por %p163, %p164
      %p166 = scmp.ne.s32.totalorder %s155, %s156
      %p167 = scmp.eq.s32.totalorder %s31, 0
      %p168 = por %p166, %p167
      %p169 = scmp.ne.s32.totalorder %s155, %s156
      %p170 = scmp.eq.s32.totalorder %s32, 3
      %p171 = por %p169, %p170
      %p173 = scmp.ne.s32.totalorder %s156, %s172
      %p174 = scmp.eq.s32.totalorder %s32, 0
      %p175 = por %p173, %p174
      %s176 = ssub.s32 %s34, %s41
      %p177 = scmp.eq.s32.totalorder %s176, 0
      %s179 = sadd.s32 %s178, 1
      %s180 = scalar_select %p177, %s178, %s179
      %p183 = pneg %p177
      %p184 = scmp.eq.s32.totalorder %s26, 3
      %p185 = por %p183, %p184
      %p186 = scmp.ne.s32.totalorder %s178, %s181
      %p187 = scmp.eq.s32.totalorder %s26, 0
      %p188 = por %p186, %p187
      %p189 = scmp.ne.s32.totalorder %s178, %s181
      %p190 = scmp.eq.s32.totalorder %s31, 3
      %p191 = por %p189, %p190
      %p192 = scmp.ne.s32.totalorder %s181, %s182
      %p193 = scmp.eq.s32.totalorder %s31, 0
      %p194 = por %p192, %p193
      %p195 = scmp.ne.s32.totalorder %s181, %s182
      %p196 = scmp.eq.s32.totalorder %s32, 3
      %p197 = por %p195, %p196
      %p199 = scmp.ne.s32.totalorder %s182, %s198
      %p200 = scmp.eq.s32.totalorder %s32, 0
      %p201 = por %p199, %p200
      %s202 = ssub.s32 %s34, %s41
      %p203 = scmp.eq.s32.totalorder %s202, 0
      %s205 = sadd.s32 %s204, 1
      %s206 = scalar_select %p203, %s204, %s205
      %p209 = pneg %p203
      %p210 = scmp.eq.s32.totalorder %s26, 3
      %p211 = por %p209, %p210
      %p212 = scmp.ne.s32.totalorder %s204, %s207
      %p213 = scmp.eq.s32.totalorder %s26, 0
      %p214 = por %p212, %p213
      %p215 = scmp.ne.s32.totalorder %s204, %s207
      %p216 = scmp.eq.s32.totalorder %s31, 3
      %p217 = por %p215, %p216
      %p218 = scmp.ne.s32.totalorder %s207, %s208
      %p219 = scmp.eq.s32.totalorder %s31, 0
      %p220 = por %p218, %p219
      %p221 = scmp.ne.s32.totalorder %s207, %s208
      %p222 = scmp.eq.s32.totalorder %s32, 3
      %p223 = por %p221, %p222
      %p225 = scmp.ne.s32.totalorder %s208, %s224
      %p226 = scmp.eq.s32.totalorder %s32, 0
      %p227 = por %p225, %p226
      %s228 = ssub.s32 %s34, %s41
      %p229 = scmp.eq.s32.totalorder %s228, 0
      %s231 = sadd.s32 %s230, 1
      %s232 = scalar_select %p229, %s230, %s231
      %p235 = pneg %p229
      %p236 = scmp.eq.s32.totalorder %s26, 3
      %p237 = por %p235, %p236
      %p238 = scmp.ne.s32.totalorder %s230, %s233
      %p239 = scmp.eq.s32.totalorder %s26, 0
      %p240 = por %p238, %p239
      %p241 = scmp.ne.s32.totalorder %s230, %s233
      %p242 = scmp.eq.s32.totalorder %s31, 3
      %p243 = por %p241, %p242
      %p244 = scmp.ne.s32.totalorder %s233, %s234
      %p245 = scmp.eq.s32.totalorder %s31, 0
      %p246 = por %p244, %p245
      %p247 = scmp.ne.s32.totalorder %s233, %s234
      %p248 = scmp.eq.s32.totalorder %s32, 3
      %p249 = por %p247, %p248
      %p251 = scmp.ne.s32.totalorder %s234, %s250
      %p252 = scmp.eq.s32.totalorder %s32, 0
      %p253 = por %p251, %p252
      %s254 = ssub.s32 %s34, %s41
      %p255 = scmp.eq.s32.totalorder %s254, 0
      %s257 = sadd.s32 %s256, 1
      %s258 = scalar_select %p255, %s256, %s257
      %p261 = pneg %p255
      %p262 = scmp.eq.s32.totalorder %s26, 3
      %p263 = por %p261, %p262
      %p264 = scmp.ne.s32.totalorder %s256, %s259
      %p265 = scmp.eq.s32.totalorder %s26, 0
      %p266 = por %p264, %p265
      %p267 = scmp.ne.s32.totalorder %s256, %s259
      %p268 = scmp.eq.s32.totalorder %s31, 3
      %p269 = por %p267, %p268
      %p270 = scmp.ne.s32.totalorder %s259, %s260
      %p271 = scmp.eq.s32.totalorder %s31, 0
      %p272 = por %p270, %p271
      %p273 = scmp.ne.s32.totalorder %s259, %s260
      %p274 = scmp.eq.s32.totalorder %s32, 3
      %p275 = por %p273, %p274
      %p277 = scmp.ne.s32.totalorder %s260, %s276
      %p278 = scmp.eq.s32.totalorder %s32, 0
      %p279 = por %p277, %p278
      %s280 = ssub.s32 %s34, %s41
      %p281 = scmp.eq.s32.totalorder %s280, 0
      %s283 = sadd.s32 %s282, 1
      %s284 = scalar_select %p281, %s282, %s283
      %p287 = pneg %p281
      %p288 = scmp.eq.s32.totalorder %s26, 3
      %p289 = por %p287, %p288
      %p290 = scmp.ne.s32.totalorder %s282, %s285
      %p291 = scmp.eq.s32.totalorder %s26, 0
      %p292 = por %p290, %p291
      %p293 = scmp.ne.s32.totalorder %s282, %s285
      %p294 = scmp.eq.s32.totalorder %s31, 3
      %p295 = por %p293, %p294
      %p296 = scmp.ne.s32.totalorder %s285, %s286
      %p297 = scmp.eq.s32.totalorder %s31, 0
      %p298 = por %p296, %p297
      %p299 = scmp.ne.s32.totalorder %s285, %s286
      %p300 = scmp.eq.s32.totalorder %s32, 3
      %p301 = por %p299, %p300
      %p303 = scmp.ne.s32.totalorder %s286, %s302
      %p304 = scmp.eq.s32.totalorder %s32, 0
      %p305 = por %p303, %p304
      %s306 = ssub.s32 %s34, %s41
      %p307 = scmp.eq.s32.totalorder %s306, 0
      %s309 = sadd.s32 %s308, 1
      %s310 = scalar_select %p307, %s308, %s309
      %p313 = pneg %p307
      %p314 = scmp.eq.s32.totalorder %s26, 3
      %p315 = por %p313, %p314
      %p316 = scmp.ne.s32.totalorder %s308, %s311
      %p317 = scmp.eq.s32.totalorder %s26, 0
      %p318 = por %p316, %p317
      %p319 = scmp.ne.s32.totalorder %s308, %s311
      %p320 = scmp.eq.s32.totalorder %s31, 3
      %p321 = por %p319, %p320
      %p322 = scmp.ne.s32.totalorder %s311, %s312
      %p323 = scmp.eq.s32.totalorder %s31, 0
      %p324 = por %p322, %p323
      %p325 = scmp.ne.s32.totalorder %s311, %s312
      %p326 = scmp.eq.s32.totalorder %s32, 3
      %p327 = por %p325, %p326
      %p329 = scmp.ne.s32.totalorder %s312, %s328
      %p330 = scmp.eq.s32.totalorder %s32, 0
      %p331 = por %p329, %p330
      %s332 = ssub.s32 %s34, %s41
      %p333 = scmp.eq.s32.totalorder %s332, 0
      %s335 = sadd.s32 %s334, 1
      %s336 = scalar_select %p333, %s334, %s335
      %p339 = pneg %p333
      %p340 = scmp.eq.s32.totalorder %s26, 3
      %p341 = por %p339, %p340
      %p342 = scmp.ne.s32.totalorder %s334, %s337
      %p343 = scmp.eq.s32.totalorder %s26, 0
      %p344 = por %p342, %p343
      %p345 = scmp.ne.s32.totalorder %s334, %s337
      %p346 = scmp.eq.s32.totalorder %s31, 3
      %p347 = por %p345, %p346
      %p348 = scmp.ne.s32.totalorder %s337, %s338
      %p349 = scmp.eq.s32.totalorder %s31, 0
      %p350 = por %p348, %p349
      %p351 = scmp.ne.s32.totalorder %s337, %s338
      %p352 = scmp.eq.s32.totalorder %s32, 3
      %p353 = por %p351, %p352
      %p355 = scmp.ne.s32.totalorder %s338, %s354
      %p356 = scmp.eq.s32.totalorder %s32, 0
      %p357 = por %p355, %p356
      %s358 = ssub.s32 %s34, %s41
      %p359 = scmp.eq.s32.totalorder %s358, 0
      %s361 = sadd.s32 %s360, 1
      %s362 = scalar_select %p359, %s360, %s361
      %p365 = pneg %p359
      %p366 = scmp.eq.s32.totalorder %s26, 3
      %p367 = por %p365, %p366
      %p368 = scmp.ne.s32.totalorder %s360, %s363
      %p369 = scmp.eq.s32.totalorder %s26, 0
      %p370 = por %p368, %p369
      %p371 = scmp.ne.s32.totalorder %s360, %s363
      %p372 = scmp.eq.s32.totalorder %s31, 3
      %p373 = por %p371, %p372
      %p374 = scmp.ne.s32.totalorder %s363, %s364
      %p375 = scmp.eq.s32.totalorder %s31, 0
      %p376 = por %p374, %p375
      %p377 = scmp.ne.s32.totalorder %s363, %s364
      %p378 = scmp.eq.s32.totalorder %s32, 3
      %p379 = por %p377, %p378
      %p381 = scmp.ne.s32.totalorder %s364, %s380
      %p382 = scmp.eq.s32.totalorder %s32, 0
      %p383 = por %p381, %p382
      %s384 = ssub.s32 %s34, %s41
      %p385 = scmp.eq.s32.totalorder %s384, 0
      %s387 = sadd.s32 %s386, 1
      %s388 = scalar_select %p385, %s386, %s387
      %p391 = pneg %p385
      %p392 = scmp.eq.s32.totalorder %s26, 3
      %p393 = por %p391, %p392
      %p394 = scmp.ne.s32.totalorder %s386, %s389
      %p395 = scmp.eq.s32.totalorder %s26, 0
      %p396 = por %p394, %p395
      %p397 = scmp.ne.s32.totalorder %s386, %s389
      %p398 = scmp.eq.s32.totalorder %s31, 3
      %p399 = por %p397, %p398
      %p400 = scmp.ne.s32.totalorder %s389, %s390
      %p401 = scmp.eq.s32.totalorder %s31, 0
      %p402 = por %p400, %p401
      %p403 = scmp.ne.s32.totalorder %s389, %s390
      %p404 = scmp.eq.s32.totalorder %s32, 3
      %p405 = por %p403, %p404
      %p407 = scmp.ne.s32.totalorder %s390, %s406
      %p408 = scmp.eq.s32.totalorder %s32, 0
      %p409 = por %p407, %p408
      %s410 = ssub.s32 %s34, %s41
      %p411 = scmp.eq.s32.totalorder %s410, 0
      %s413 = sadd.s32 %s412, 1
      %s414 = scalar_select %p411, %s412, %s413
      %p417 = pneg %p411
      %p418 = scmp.eq.s32.totalorder %s26, 3
      %p419 = por %p417, %p418
      %p420 = scmp.ne.s32.totalorder %s412, %s415
      %p421 = scmp.eq.s32.totalorder %s26, 0
      %p422 = por %p420, %p421
      %p423 = scmp.ne.s32.totalorder %s412, %s415
      %p424 = scmp.eq.s32.totalorder %s31, 3
      %p425 = por %p423, %p424
      %p426 = scmp.ne.s32.totalorder %s415, %s416
      %p427 = scmp.eq.s32.totalorder %s31, 0
      %p428 = por %p426, %p427
      %p429 = scmp.ne.s32.totalorder %s415, %s416
      %p430 = scmp.eq.s32.totalorder %s32, 3
      %p431 = por %p429, %p430
      %p433 = scmp.ne.s32.totalorder %s416, %s432
      %p434 = scmp.eq.s32.totalorder %s32, 0
      %p435 = por %p433, %p434
      %s436 = ssub.s32 %s34, %s41
      %p437 = scmp.eq.s32.totalorder %s436, 0
      %s439 = sadd.s32 %s438, 1
      %s440 = scalar_select %p437, %s438, %s439
      %p443 = pneg %p437
      %p444 = scmp.eq.s32.totalorder %s26, 3
      %p445 = por %p443, %p444
      %p446 = scmp.ne.s32.totalorder %s438, %s441
      %p447 = scmp.eq.s32.totalorder %s26, 0
      %p448 = por %p446, %p447
      %p449 = scmp.ne.s32.totalorder %s438, %s441
      %p450 = scmp.eq.s32.totalorder %s31, 3
      %p451 = por %p449, %p450
      %p452 = scmp.ne.s32.totalorder %s441, %s442
      %p453 = scmp.eq.s32.totalorder %s31, 0
      %p454 = por %p452, %p453
      %p455 = scmp.ne.s32.totalorder %s441, %s442
      %p456 = scmp.eq.s32.totalorder %s32, 3
      %p457 = por %p455, %p456
      %p459 = scmp.ne.s32.totalorder %s442, %s458
      %p460 = scmp.eq.s32.totalorder %s32, 0
      %p461 = por %p459, %p460
      %s462 = ssub.s32 %s34, %s41
      %p463 = scmp.eq.s32.totalorder %s462, 0
      %s465 = sadd.s32 %s464, 1
      %s466 = scalar_select %p463, %s464, %s465
      %p469 = pneg %p463
      %p470 = scmp.eq.s32.totalorder %s26, 3
      %p471 = por %p469, %p470
      %p472 = scmp.ne.s32.totalorder %s464, %s467
      %p473 = scmp.eq.s32.totalorder %s26, 0
      %p474 = por %p472, %p473
      %p475 = scmp.ne.s32.totalorder %s464, %s467
      %p476 = scmp.eq.s32.totalorder %s31, 3
      %p477 = por %p475, %p476
      %p478 = scmp.ne.s32.totalorder %s467, %s468
      %p479 = scmp.eq.s32.totalorder %s31, 0
      %p480 = por %p478, %p479
      %p481 = scmp.ne.s32.totalorder %s467, %s468
      %p482 = scmp.eq.s32.totalorder %s32, 3
      %p483 = por %p481, %p482
      %p485 = scmp.ne.s32.totalorder %s468, %s484
      %p486 = scmp.eq.s32.totalorder %s32, 0
      %p487 = por %p485, %p486
      %s488 = ssub.s32 %s33, %s45
      %p489 = scmp.eq.s32.totalorder %s488, 0
      %s491 = sadd.s32 %s490, 1
      %s492 = scalar_select %p489, %s490, %s491
      %p495 = pneg %p489
      %p496 = scmp.eq.s32.totalorder %s26, 3
      %p497 = por %p495, %p496
      %p498 = scmp.ne.s32.totalorder %s490, %s493
      %p499 = scmp.eq.s32.totalorder %s26, 0
      %p500 = por %p498, %p499
      %p501 = scmp.ne.s32.totalorder %s490, %s493
      %p502 = scmp.eq.s32.totalorder %s31, 3
      %p503 = por %p501, %p502
      %p504 = scmp.ne.s32.totalorder %s493, %s494
      %p505 = scmp.eq.s32.totalorder %s31, 0
      %p506 = por %p504, %p505
      %p507 = scmp.ne.s32.totalorder %s493, %s494
      %p508 = scmp.eq.s32.totalorder %s32, 3
      %p509 = por %p507, %p508
      %p511 = scmp.ne.s32.totalorder %s494, %s510
      %p512 = scmp.eq.s32.totalorder %s32, 0
      %p513 = por %p511, %p512
      %p514 = scmp.le.s32.totalorder 1, %s26
      %p515 = scmp.lt.s32.totalorder %s26, 5
      %p516 = pnand %p514, %p515
      %p517 = pneg %p516
      // Predicated region
      $region9: #{tpu_custom_call.1} parent=5 // pred_check
        _
      $region10: #{tpu_custom_call.1} parent=5 // pred_check_branch
        %519 = sbr.rel (%p516) target = $region12
      $region11: #{tpu_custom_call.1} parent=5 // pred_region
        %s520 = ssub.s32 %s26, 1
      $region12: #{tpu_custom_call.1} parent=5 // pred_fallthru
        _
      %p521 = scmp.lt.s32.totalorder %s26, 4
      // Predicated region
      $region13: #{tpu_custom_call.1} parent=5 // pred_check
        %p522 = pneg %p521
      $region14: #{tpu_custom_call.1} parent=5 // pred_check_branch
        %524 = sbr.rel (%p522) target = $region16
      $region15: #{tpu_custom_call.1} parent=5 // pred_region
        // Predicated region
        $region17: #{tpu_custom_call.1} parent=15 // pred_check
          %p525 = pneg %p58
        $region18: #{tpu_custom_call.1} parent=15 // pred_check_branch
          %527 = sbr.rel (%p525) target = $region20
        $region19: #{tpu_custom_call.1} parent=15 // pred_region
          %p528 = scmp.lt.s32.totalorder %s33, 1
          %s529 = scalar_select %p528, %s33, 1
          %s530 = smul.addr %s529, 8
          %s531 = scalar_lea.vmem %s0, %s530
        $region20: #{tpu_custom_call.1} parent=15 // pred_fallthru
          _
        // Predicated region
        $region21: #{tpu_custom_call.1} parent=15 // pred_check
          %p532 = pneg %p84
        $region22: #{tpu_custom_call.1} parent=15 // pred_check_branch
          %534 = sbr.rel (%p532) target = $region24
        $region23: #{tpu_custom_call.1} parent=15 // pred_region
          %p535 = scmp.lt.s32.totalorder %s34, 1
          %s536 = scalar_select %p535, %s34, 1
          %s537 = smul.addr %s536, 16
          %s538 = smul.addr %s537, 4
          %s539 = scalar_lea.vmem %s1, %s538
        $region24: #{tpu_custom_call.1} parent=15 // pred_fallthru
          _
        // Predicated region
        $region25: #{tpu_custom_call.1} parent=15 // pred_check
          %p540 = pneg %p110
        $region26: #{tpu_custom_call.1} parent=15 // pred_check_branch
          %542 = sbr.rel (%p540) target = $region28
        $region27: #{tpu_custom_call.1} parent=15 // pred_region
          %p543 = scmp.lt.s32.totalorder %s34, 1
          %s544 = scalar_select %p543, %s34, 1
          %s545 = scalar_lea.vmem %s2, %s544
        $region28: #{tpu_custom_call.1} parent=15 // pred_fallthru
          _
        // Predicated region
        $region29: #{tpu_custom_call.1} parent=15 // pred_check
          %p546 = pneg %p136
        $region30: #{tpu_custom_call.1} parent=15 // pred_check_branch
          %548 = sbr.rel (%p546) target = $region32
        $region31: #{tpu_custom_call.1} parent=15 // pred_region
          %p549 = scmp.lt.s32.totalorder %s34, 1
          %s550 = scalar_select %p549, %s34, 1
          %s551 = smul.addr %s550, 16
          %s552 = smul.addr %s551, 4
          %s553 = scalar_lea.vmem %s3, %s552
        $region32: #{tpu_custom_call.1} parent=15 // pred_fallthru
          _
        // Predicated region
        $region33: #{tpu_custom_call.1} parent=15 // pred_check
          %p554 = pneg %p162
        $region34: #{tpu_custom_call.1} parent=15 // pred_check_branch
          %556 = sbr.rel (%p554) target = $region36
        $region35: #{tpu_custom_call.1} parent=15 // pred_region
          %p557 = scmp.lt.s32.totalorder %s34, 1
          %s558 = scalar_select %p557, %s34, 1
          %s559 = scalar_lea.vmem %s4, %s558
        $region36: #{tpu_custom_call.1} parent=15 // pred_fallthru
          _
        // Predicated region
        $region37: #{tpu_custom_call.1} parent=15 // pred_check
          %p560 = pneg %p188
        $region38: #{tpu_custom_call.1} parent=15 // pred_check_branch
          %562 = sbr.rel (%p560) target = $region40
        $region39: #{tpu_custom_call.1} parent=15 // pred_region
          %p563 = scmp.lt.s32.totalorder %s34, 1
          %s564 = scalar_select %p563, %s34, 1
          %s565 = smul.addr %s564, 16
          %s566 = smul.addr %s565, 4
          %s567 = scalar_lea.vmem %s5, %s566
        $region40: #{tpu_custom_call.1} parent=15 // pred_fallthru
          _
        // Predicated region
        $region41: #{tpu_custom_call.1} parent=15 // pred_check
          %p568 = pneg %p214
        $region42: #{tpu_custom_call.1} parent=15 // pred_check_branch
          %570 = sbr.rel (%p568) target = $region44
        $region43: #{tpu_custom_call.1} parent=15 // pred_region
          %p571 = scmp.lt.s32.totalorder %s34, 1
          %s572 = scalar_select %p571, %s34, 1
          %s573 = scalar_lea.vmem %s6, %s572
        $region44: #{tpu_custom_call.1} parent=15 // pred_fallthru
          _
        // Predicated region
        $region45: #{tpu_custom_call.1} parent=15 // pred_check
          %p574 = pneg %p240
        $region46: #{tpu_custom_call.1} parent=15 // pred_check_branch
          %576 = sbr.rel (%p574) target = $region48
        $region47: #{tpu_custom_call.1} parent=15 // pred_region
          %p577 = scmp.lt.s32.totalorder %s34, 1
          %s578 = scalar_select %p577, %s34, 1
          %s579 = smul.addr %s578, 4
          %s580 = smul.addr %s579, 4
          %s581 = scalar_lea.vmem %s7, %s580
        $region48: #{tpu_custom_call.1} parent=15 // pred_fallthru
          _
        // Predicated region
        $region49: #{tpu_custom_call.1} parent=15 // pred_check
          %p582 = pneg %p266
        $region50: #{tpu_custom_call.1} parent=15 // pred_check_branch
          %584 = sbr.rel (%p582) target = $region52
        $region51: #{tpu_custom_call.1} parent=15 // pred_region
          %p585 = scmp.lt.s32.totalorder %s34, 1
          %s586 = scalar_select %p585, %s34, 1
          %s587 = scalar_lea.vmem %s8, %s586
        $region52: #{tpu_custom_call.1} parent=15 // pred_fallthru
          _
        // Predicated region
        $region53: #{tpu_custom_call.1} parent=15 // pred_check
          %p588 = pneg %p292
        $region54: #{tpu_custom_call.1} parent=15 // pred_check_branch
          %590 = sbr.rel (%p588) target = $region56
        $region55: #{tpu_custom_call.1} parent=15 // pred_region
          %p591 = scmp.lt.s32.totalorder %s34, 1
          %s592 = scalar_select %p591, %s34, 1
          %s593 = scalar_lea.vmem %s9, %s592
        $region56: #{tpu_custom_call.1} parent=15 // pred_fallthru
          _
        // Predicated region
        $region57: #{tpu_custom_call.1} parent=15 // pred_check
          %p594 = pneg %p318
        $region58: #{tpu_custom_call.1} parent=15 // pred_check_branch
          %596 = sbr.rel (%p594) target = $region60
        $region59: #{tpu_custom_call.1} parent=15 // pred_region
          %p597 = scmp.lt.s32.totalorder %s34, 1
          %s598 = scalar_select %p597, %s34, 1
          %s599 = scalar_lea.vmem %s10, %s598
        $region60: #{tpu_custom_call.1} parent=15 // pred_fallthru
          _
        // Predicated region
        $region61: #{tpu_custom_call.1} parent=15 // pred_check
          %p600 = pneg %p344
        $region62: #{tpu_custom_call.1} parent=15 // pred_check_branch
          %602 = sbr.rel (%p600) target = $region64
        $region63: #{tpu_custom_call.1} parent=15 // pred_region
          %p603 = scmp.lt.s32.totalorder %s34, 1
          %s604 = scalar_select %p603, %s34, 1
          %s605 = smul.addr %s604, 16
          %s606 = smul.addr %s605, 4
          %s607 = scalar_lea.vmem %s11, %s606
        $region64: #{tpu_custom_call.1} parent=15 // pred_fallthru
          _
        // Predicated region
        $region65: #{tpu_custom_call.1} parent=15 // pred_check
          %p608 = pneg %p370
        $region66: #{tpu_custom_call.1} parent=15 // pred_check_branch
          %610 = sbr.rel (%p608) target = $region68
        $region67: #{tpu_custom_call.1} parent=15 // pred_region
          %p611 = scmp.lt.s32.totalorder %s34, 1
          %s612 = scalar_select %p611, %s34, 1
          %s613 = scalar_lea.vmem %s12, %s612
        $region68: #{tpu_custom_call.1} parent=15 // pred_fallthru
          _
        // Predicated region
        $region69: #{tpu_custom_call.1} parent=15 // pred_check
          %p614 = pneg %p396
        $region70: #{tpu_custom_call.1} parent=15 // pred_check_branch
          %616 = sbr.rel (%p614) target = $region72
        $region71: #{tpu_custom_call.1} parent=15 // pred_region
          %p617 = scmp.lt.s32.totalorder %s34, 1
          %s618 = scalar_select %p617, %s34, 1
          %s619 = smul.addr %s618, 16
          %s620 = smul.addr %s619, 4
          %s621 = scalar_lea.vmem %s13, %s620
        $region72: #{tpu_custom_call.1} parent=15 // pred_fallthru
          _
        // Predicated region
        $region73: #{tpu_custom_call.1} parent=15 // pred_check
          %p622 = pneg %p422
        $region74: #{tpu_custom_call.1} parent=15 // pred_check_branch
          %624 = sbr.rel (%p622) target = $region76
        $region75: #{tpu_custom_call.1} parent=15 // pred_region
          %p625 = scmp.lt.s32.totalorder %s34, 1
          %s626 = scalar_select %p625, %s34, 1
          %s627 = scalar_lea.vmem %s14, %s626
        $region76: #{tpu_custom_call.1} parent=15 // pred_fallthru
          _
        // Predicated region
        $region77: #{tpu_custom_call.1} parent=15 // pred_check
          %p628 = pneg %p448
        $region78: #{tpu_custom_call.1} parent=15 // pred_check_branch
          %630 = sbr.rel (%p628) target = $region80
        $region79: #{tpu_custom_call.1} parent=15 // pred_region
          %p631 = scmp.lt.s32.totalorder %s34, 1
          %s632 = scalar_select %p631, %s34, 1
          %s633 = scalar_lea.vmem %s15, %s632
        $region80: #{tpu_custom_call.1} parent=15 // pred_fallthru
          _
        // Predicated region
        $region81: #{tpu_custom_call.1} parent=15 // pred_check
          %p634 = pneg %p474
        $region82: #{tpu_custom_call.1} parent=15 // pred_check_branch
          %636 = sbr.rel (%p634) target = $region84
        $region83: #{tpu_custom_call.1} parent=15 // pred_region
          %p637 = scmp.lt.s32.totalorder %s34, 1
          %s638 = scalar_select %p637, %s34, 1
          %s639 = scalar_lea.vmem %s16, %s638
        $region84: #{tpu_custom_call.1} parent=15 // pred_fallthru
          _
      $region16: #{tpu_custom_call.1} parent=5 // pred_fallthru
        _
      %p640 = scmp.le.s32.totalorder 1, %s26
      %p641 = scmp.lt.s32.totalorder %s26, 5
      %p642 = pnand %p640, %p641
      %p643 = pneg %p642
      // Predicated region
      $region85: #{tpu_custom_call.1} parent=5 // pred_check
        _
      $region86: #{tpu_custom_call.1} parent=5 // pred_check_branch
        %645 = sbr.rel (%p642) target = $region88
      $region87: #{tpu_custom_call.1} parent=5 // pred_region
        %s646 = ssub.s32 %s26, 1
        %p647 = scmp.lt.s32.totalorder %s35, 1
        %s648 = scalar_select %p647, %s35, 1
        %s649 = smul.addr %s648, 8
        %s650 = scalar_lea.vmem %s0, %s649
        %p651 = pneg %p64
        %p652 = pneg %p61
        %p653 = scmp.lt.s32.totalorder %s36, 1
        %s654 = scalar_select %p653, %s36, 1
        %s655 = smul.addr %s654, 16
        %s656 = smul.addr %s655, 4
        %s657 = scalar_lea.vmem %s1, %s656
        %p658 = pneg %p90
        %p659 = pneg %p87
        %p660 = scmp.lt.s32.totalorder %s36, 1
        %s661 = scalar_select %p660, %s36, 1
        %s662 = scalar_lea.vmem %s2, %s661
        %p663 = pneg %p116
        %p664 = pneg %p113
        %p665 = scmp.lt.s32.totalorder %s36, 1
        %s666 = scalar_select %p665, %s36, 1
        %s667 = smul.addr %s666, 16
        %s668 = smul.addr %s667, 4
        %s669 = scalar_lea.vmem %s3, %s668
        %p670 = pneg %p142
        %p671 = pneg %p139
        %p672 = scmp.lt.s32.totalorder %s36, 1
        %s673 = scalar_select %p672, %s36, 1
        %s674 = scalar_lea.vmem %s4, %s673
        %p675 = pneg %p168
        %p676 = pneg %p165
        %p677 = scmp.lt.s32.totalorder %s36, 1
        %s678 = scalar_select %p677, %s36, 1
        %s679 = smul.addr %s678, 16
        %s680 = smul.addr %s679, 4
        %s681 = scalar_lea.vmem %s5, %s680
        %p682 = pneg %p194
        %p683 = pneg %p191
        %p684 = scmp.lt.s32.totalorder %s36, 1
        %s685 = scalar_select %p684, %s36, 1
        %s686 = scalar_lea.vmem %s6, %s685
        %p687 = pneg %p220
        %p688 = pneg %p217
        %p689 = scmp.lt.s32.totalorder %s36, 1
        %s690 = scalar_select %p689, %s36, 1
        %s691 = smul.addr %s690, 4
        %s692 = smul.addr %s691, 4
        %s693 = scalar_lea.vmem %s7, %s692
        %p694 = pneg %p246
        %p695 = pneg %p243
        %p696 = scmp.lt.s32.totalorder %s36, 1
        %s697 = scalar_select %p696, %s36, 1
        %s698 = scalar_lea.vmem %s8, %s697
        %p699 = pneg %p272
        %p700 = pneg %p269
        %p701 = scmp.lt.s32.totalorder %s36, 1
        %s702 = scalar_select %p701, %s36, 1
        %s703 = scalar_lea.vmem %s9, %s702
        %p704 = pneg %p298
        %p705 = pneg %p295
        %p706 = scmp.lt.s32.totalorder %s36, 1
        %s707 = scalar_select %p706, %s36, 1
        %s708 = scalar_lea.vmem %s10, %s707
        %p709 = pneg %p324
        %p710 = pneg %p321
        %p711 = scmp.lt.s32.totalorder %s36, 1
        %s712 = scalar_select %p711, %s36, 1
        %s713 = smul.addr %s712, 16
        %s714 = smul.addr %s713, 4
        %s715 = scalar_lea.vmem %s11, %s714
        %p716 = pneg %p350
        %p717 = pneg %p347
        %p718 = scmp.lt.s32.totalorder %s36, 1
        %s719 = scalar_select %p718, %s36, 1
        %s720 = scalar_lea.vmem %s12, %s719
        %p721 = pneg %p376
        %p722 = pneg %p373
        %p723 = scmp.lt.s32.totalorder %s36, 1
        %s724 = scalar_select %p723, %s36, 1
        %s725 = smul.addr %s724, 16
        %s726 = smul.addr %s725, 4
        %s727 = scalar_lea.vmem %s13, %s726
        %p728 = pneg %p402
        %p729 = pneg %p399
        %p730 = scmp.lt.s32.totalorder %s36, 1
        %s731 = scalar_select %p730, %s36, 1
        %s732 = scalar_lea.vmem %s14, %s731
        %p733 = pneg %p428
        %p734 = pneg %p425
        %p735 = scmp.lt.s32.totalorder %s36, 1
        %s736 = scalar_select %p735, %s36, 1
        %s737 = scalar_lea.vmem %s15, %s736
        %p738 = pneg %p454
        %p739 = pneg %p451
        %p740 = scmp.lt.s32.totalorder %s36, 1
        %s741 = scalar_select %p740, %s36, 1
        %s742 = scalar_lea.vmem %s16, %s741
        %p743 = pneg %p480
        %p744 = pneg %p477
        %p745 = pneg %p506
        %p746 = pneg %p503
        %s747 = sand.u32 %s493, 1
        %s748 = scalar_lea.sflag [#allocation5], %s747
        %s749 = sand.u32 %s493, 1
        %s750 = smul.addr %s749, 8
        %s751 = scalar_lea.vmem [#allocation4], %s750
        %p752 = scmp.lt.s32.totalorder %s35, 1
        %s753 = scalar_select %p752, %s35, 1
        %s754 = smul.addr %s753, 8
        %s755 = scalar_lea.vmem %s0, %s754
        %p756 = scmp.lt.s32.totalorder %s36, 1
        %s757 = scalar_select %p756, %s36, 1
        %s758 = smul.addr %s757, 16
        %s759 = smul.addr %s758, 4
        %s760 = scalar_lea.vmem %s1, %s759
        %p761 = scmp.lt.s32.totalorder %s36, 1
        %s762 = scalar_select %p761, %s36, 1
        %s763 = scalar_lea.vmem %s2, %s762
        %p764 = scmp.lt.s32.totalorder %s36, 1
        %s765 = scalar_select %p764, %s36, 1
        %s766 = smul.addr %s765, 16
        %s767 = smul.addr %s766, 4
        %s768 = scalar_lea.vmem %s3, %s767
        %p769 = scmp.lt.s32.totalorder %s36, 1
        %s770 = scalar_select %p769, %s36, 1
        %s771 = scalar_lea.vmem %s4, %s770
        %p772 = scmp.lt.s32.totalorder %s36, 1
        %s773 = scalar_select %p772, %s36, 1
        %s774 = smul.addr %s773, 16
        %s775 = smul.addr %s774, 4
        %s776 = scalar_lea.vmem %s5, %s775
        %p777 = scmp.lt.s32.totalorder %s36, 1
        %s778 = scalar_select %p777, %s36, 1
        %s779 = scalar_lea.vmem %s6, %s778
        %p780 = scmp.lt.s32.totalorder %s36, 1
        %s781 = scalar_select %p780, %s36, 1
        %s782 = smul.addr %s781, 4
        %s783 = smul.addr %s782, 4
        %s784 = scalar_lea.vmem %s7, %s783
        %p785 = scmp.lt.s32.totalorder %s36, 1
        %s786 = scalar_select %p785, %s36, 1
        %s787 = scalar_lea.vmem %s8, %s786
        %p788 = scmp.lt.s32.totalorder %s36, 1
        %s789 = scalar_select %p788, %s36, 1
        %s790 = scalar_lea.vmem %s9, %s789
        %p791 = scmp.lt.s32.totalorder %s36, 1
        %s792 = scalar_select %p791, %s36, 1
        %s793 = scalar_lea.vmem %s10, %s792
        %p794 = scmp.lt.s32.totalorder %s36, 1
        %s795 = scalar_select %p794, %s36, 1
        %s796 = smul.addr %s795, 16
        %s797 = smul.addr %s796, 4
        %s798 = scalar_lea.vmem %s11, %s797
        %p799 = scmp.lt.s32.totalorder %s36, 1
        %s800 = scalar_select %p799, %s36, 1
        %s801 = scalar_lea.vmem %s12, %s800
        %p802 = scmp.lt.s32.totalorder %s36, 1
        %s803 = scalar_select %p802, %s36, 1
        %s804 = smul.addr %s803, 16
        %s805 = smul.addr %s804, 4
        %s806 = scalar_lea.vmem %s13, %s805
        %p807 = scmp.lt.s32.totalorder %s36, 1
        %s808 = scalar_select %p807, %s36, 1
        %s809 = scalar_lea.vmem %s14, %s808
        %p810 = scmp.lt.s32.totalorder %s36, 1
        %s811 = scalar_select %p810, %s36, 1
        %s812 = scalar_lea.vmem %s15, %s811
        %p813 = scmp.lt.s32.totalorder %s36, 1
        %s814 = scalar_select %p813, %s36, 1
        %s815 = scalar_lea.vmem %s16, %s814
        %p817 = scmp.eq.s32.totalorder %s36, 0
        // Predicated region
        $region89: #{tpu_custom_call.1} parent=87 // pred_check
          %p818 = pneg %p817
        $region90: #{tpu_custom_call.1} parent=87 // pred_check_branch
          %820 = sbr.rel (%p818) target = $region92
        $region91: #{tpu_custom_call.1} parent=87 // pred_region
          %v821 = vld [vmem:[%s755] sm:$0xff]
          %822 = vst [vmem:[#allocation2] sm:$0xff] %v821
        $region92: #{tpu_custom_call.1} parent=87 // pred_fallthru
          _
        %v823 = vld [vmem:[#allocation2] sm:$0xff]
        %v824 = vlaneseq
        %v825 = vand.u32 %v824, 127
        %vm826 = vcmp.lt.s32.totalorder %v825, 32
        %v827 = vpack.c.bf16 %v823, %v823
        %v828 = vld [vmem:[%s760] sm:$0xf]
        %v829 = vld [vmem:[%s760 + $0x4] sm:$0xf]
        %v830 = vld [vmem:[%s760 + $0x8] sm:$0xf]
        %v831 = vld [vmem:[%s760 + $0xc] sm:$0xf]
        %v832 = vld [vmem:[%s760 + $0x10] sm:$0xf]
        %v833 = vld [vmem:[%s760 + $0x14] sm:$0xf]
        %v834 = vld [vmem:[%s760 + $0x18] sm:$0xf]
        %v835 = vld [vmem:[%s760 + $0x1c] sm:$0xf]
        %v836 = vld [vmem:[%s760 + $0x20] sm:$0xf]
        %v837 = vld [vmem:[%s760 + $0x24] sm:$0xf]
        %v838 = vld [vmem:[%s760 + $0x28] sm:$0xf]
        %v839 = vld [vmem:[%s760 + $0x2c] sm:$0xf]
        %v840 = vld [vmem:[%s760 + $0x30] sm:$0xf]
        %v841 = vld [vmem:[%s760 + $0x34] sm:$0xf]
        %v842 = vld [vmem:[%s760 + $0x38] sm:$0xf]
        %v843 = vld [vmem:[%s760 + $0x3c] sm:$0xf]
        %v844 = vld [vmem:[%s763] sm:$0x1]
        %v846 = vlaneseq
        %v847 = vshrl.u32 %v846, 7
        %v848 = vsub.s32 0, %v847
        %v849 = vrot.slane %v844, %v848
        %v867 = vunpack.c.l.b16 %v828
        %v868 = vunpack.c.l.b16 %v829
        %v869 = vunpack.c.l.b16 %v830
        %v870 = vunpack.c.l.b16 %v831
        %v871 = vunpack.c.l.b16 %v832
        %v872 = vunpack.c.l.b16 %v833
        %v873 = vunpack.c.l.b16 %v834
        %v874 = vunpack.c.l.b16 %v835
        %v875 = vunpack.c.l.b16 %v836
        %v876 = vunpack.c.l.b16 %v837
        %v877 = vunpack.c.l.b16 %v838
        %v878 = vunpack.c.l.b16 %v839
        %v879 = vunpack.c.l.b16 %v840
        %v880 = vunpack.c.l.b16 %v841
        %v881 = vunpack.c.l.b16 %v842
        %v882 = vunpack.c.l.b16 %v843
        %v883 = vpack.c.b16 %v868, %v867
        %v884 = vpack.c.b16 %v870, %v869
        %v885 = vpack.c.b16 %v872, %v871
        %v886 = vpack.c.b16 %v874, %v873
        %v887 = vpack.c.b16 %v876, %v875
        %v888 = vpack.c.b16 %v878, %v877
        %v889 = vpack.c.b16 %v880, %v879
        %v890 = vpack.c.b16 %v882, %v881
        %899 = vmatprep.subr.bf16.mxu0 0
        %900 = vmatpush1.bf16.msra.mxu0 %v890
        %901 = vmatprep.subr.bf16.mxu0 0
        %902 = vmatpush1.bf16.msra.mxu0 %v889
        %903 = vmatprep.subr.bf16.mxu0 0
        %904 = vmatpush1.bf16.msra.mxu0 %v888
        %905 = vmatprep.subr.bf16.mxu0 0
        %906 = vmatpush1.bf16.msra.mxu0 %v887
        %907 = vmatprep.subr.bf16.mxu0 0
        %908 = vmatpush1.bf16.msra.mxu0 %v886
        %909 = vmatprep.subr.bf16.mxu0 0
        %910 = vmatpush1.bf16.msra.mxu0 %v885
        %911 = vmatprep.subr.bf16.mxu0 0
        %912 = vmatpush1.bf16.msra.mxu0 %v884
        %913 = vmatprep.subr.bf16.mxu0 0
        %914 = vmatpush1.bf16.msra.mxu0 %v883
        %915 = vmatprep.subr.bf16.mxu0 0
        %916 = vmatpush2.bf16.msra.mxu0 0
        %917 = vmatprep.subr.bf16.mxu0 0
        %918 = vmatpush2.bf16.msra.mxu0 0
        %919 = vmatprep.subr.bf16.mxu0 0
        %920 = vmatpush2.bf16.msra.mxu0 0
        %921 = vmatprep.subr.bf16.mxu0 0
        %922 = vmatpush2.bf16.msra.mxu0 0
        %923 = vmatprep.subr.bf16.mxu0 0
        %924 = vmatpush2.bf16.msra.mxu0 0
        %925 = vmatprep.subr.bf16.mxu0 0
        %926 = vmatpush2.bf16.msra.mxu0 0
        %927 = vmatprep.subr.bf16.mxu0 0
        %928 = vmatpush2.bf16.msra.mxu0 0
        %929 = vmatprep.subr.bf16.mxu0 0
        %930 = vmatpush2.bf16.msra.mxu0 0
        %931 = vmatprep.mubr.bf16.mxu0 0
        %932 = vmatmul.mubr.bf16.gmra.mxu0 %v827
        %v933 = vpop.f32.mrf.mxu0
        %v934 = vadd.f32 %v849, %v933
        %v935 = vpop.f32.mrf.mxu0
        %v936 = vpop.f32.mrf.mxu0
        %v937 = vpop.f32.mrf.mxu0
        %938 = vdwg.mxu0
        %v939 = vld [vmem:[%s768] sm:$0xf]
        %v940 = vld [vmem:[%s768 + $0x4] sm:$0xf]
        %v941 = vld [vmem:[%s768 + $0x8] sm:$0xf]
        %v942 = vld [vmem:[%s768 + $0xc] sm:$0xf]
        %v943 = vld [vmem:[%s768 + $0x10] sm:$0xf]
        %v944 = vld [vmem:[%s768 + $0x14] sm:$0xf]
        %v945 = vld [vmem:[%s768 + $0x18] sm:$0xf]
        %v946 = vld [vmem:[%s768 + $0x1c] sm:$0xf]
        %v947 = vld [vmem:[%s768 + $0x20] sm:$0xf]
        %v948 = vld [vmem:[%s768 + $0x24] sm:$0xf]
        %v949 = vld [vmem:[%s768 + $0x28] sm:$0xf]
        %v950 = vld [vmem:[%s768 + $0x2c] sm:$0xf]
        %v951 = vld [vmem:[%s768 + $0x30] sm:$0xf]
        %v952 = vld [vmem:[%s768 + $0x34] sm:$0xf]
        %v953 = vld [vmem:[%s768 + $0x38] sm:$0xf]
        %v954 = vld [vmem:[%s768 + $0x3c] sm:$0xf]
        %v955 = vld [vmem:[%s771] sm:$0x1]
        %v957 = vlaneseq
        %v958 = vshrl.u32 %v957, 7
        %v959 = vsub.s32 0, %v958
        %v960 = vrot.slane %v955, %v959
        %v978 = vunpack.c.l.b16 %v939
        %v979 = vunpack.c.l.b16 %v940
        %v980 = vunpack.c.l.b16 %v941
        %v981 = vunpack.c.l.b16 %v942
        %v982 = vunpack.c.l.b16 %v943
        %v983 = vunpack.c.l.b16 %v944
        %v984 = vunpack.c.l.b16 %v945
        %v985 = vunpack.c.l.b16 %v946
        %v986 = vunpack.c.l.b16 %v947
        %v987 = vunpack.c.l.b16 %v948
        %v988 = vunpack.c.l.b16 %v949
        %v989 = vunpack.c.l.b16 %v950
        %v990 = vunpack.c.l.b16 %v951
        %v991 = vunpack.c.l.b16 %v952
        %v992 = vunpack.c.l.b16 %v953
        %v993 = vunpack.c.l.b16 %v954
        %v994 = vpack.c.b16 %v979, %v978
        %v995 = vpack.c.b16 %v981, %v980
        %v996 = vpack.c.b16 %v983, %v982
        %v997 = vpack.c.b16 %v985, %v984
        %v998 = vpack.c.b16 %v987, %v986
        %v999 = vpack.c.b16 %v989, %v988
        %v1000 = vpack.c.b16 %v991, %v990
        %v1001 = vpack.c.b16 %v993, %v992
        %1010 = vmatprep.subr.bf16.mxu0 0
        %1011 = vmatpush1.bf16.msra.mxu0 %v1001
        %1012 = vmatprep.subr.bf16.mxu0 0
        %1013 = vmatpush1.bf16.msra.mxu0 %v1000
        %1014 = vmatprep.subr.bf16.mxu0 0
        %1015 = vmatpush1.bf16.msra.mxu0 %v999
        %1016 = vmatprep.subr.bf16.mxu0 0
        %1017 = vmatpush1.bf16.msra.mxu0 %v998
        %1018 = vmatprep.subr.bf16.mxu0 0
        %1019 = vmatpush1.bf16.msra.mxu0 %v997
        %1020 = vmatprep.subr.bf16.mxu0 0
        %1021 = vmatpush1.bf16.msra.mxu0 %v996
        %1022 = vmatprep.subr.bf16.mxu0 0
        %1023 = vmatpush1.bf16.msra.mxu0 %v995
        %1024 = vmatprep.subr.bf16.mxu0 0
        %1025 = vmatpush1.bf16.msra.mxu0 %v994
        %1026 = vmatprep.subr.bf16.mxu0 0
        %1027 = vmatpush2.bf16.msra.mxu0 0
        %1028 = vmatprep.subr.bf16.mxu0 0
        %1029 = vmatpush2.bf16.msra.mxu0 0
        %1030 = vmatprep.subr.bf16.mxu0 0
        %1031 = vmatpush2.bf16.msra.mxu0 0
        %1032 = vmatprep.subr.bf16.mxu0 0
        %1033 = vmatpush2.bf16.msra.mxu0 0
        %1034 = vmatprep.subr.bf16.mxu0 0
        %1035 = vmatpush2.bf16.msra.mxu0 0
        %1036 = vmatprep.subr.bf16.mxu0 0
        %1037 = vmatpush2.bf16.msra.mxu0 0
        %1038 = vmatprep.subr.bf16.mxu0 0
        %1039 = vmatpush2.bf16.msra.mxu0 0
        %1040 = vmatprep.subr.bf16.mxu0 0
        %1041 = vmatpush2.bf16.msra.mxu0 0
        %1042 = vmatprep.mubr.bf16.mxu0 0
        %1043 = vmatmul.mubr.bf16.gmra.mxu0 %v827
        %v1044 = vpop.f32.mrf.mxu0
        %v1045 = vadd.f32 %v960, %v1044
        %v1046 = vpop.f32.mrf.mxu0
        %v1047 = vpop.f32.mrf.mxu0
        %v1048 = vpop.f32.mrf.mxu0
        %1049 = vdwg.mxu0
        %v1050 = vld [vmem:[%s776] sm:$0xf]
        %v1051 = vld [vmem:[%s776 + $0x4] sm:$0xf]
        %v1052 = vld [vmem:[%s776 + $0x8] sm:$0xf]
        %v1053 = vld [vmem:[%s776 + $0xc] sm:$0xf]
        %v1054 = vld [vmem:[%s776 + $0x10] sm:$0xf]
        %v1055 = vld [vmem:[%s776 + $0x14] sm:$0xf]
        %v1056 = vld [vmem:[%s776 + $0x18] sm:$0xf]
        %v1057 = vld [vmem:[%s776 + $0x1c] sm:$0xf]
        %v1058 = vld [vmem:[%s776 + $0x20] sm:$0xf]
        %v1059 = vld [vmem:[%s776 + $0x24] sm:$0xf]
        %v1060 = vld [vmem:[%s776 + $0x28] sm:$0xf]
        %v1061 = vld [vmem:[%s776 + $0x2c] sm:$0xf]
        %v1062 = vld [vmem:[%s776 + $0x30] sm:$0xf]
        %v1063 = vld [vmem:[%s776 + $0x34] sm:$0xf]
        %v1064 = vld [vmem:[%s776 + $0x38] sm:$0xf]
        %v1065 = vld [vmem:[%s776 + $0x3c] sm:$0xf]
        %v1066 = vld [vmem:[%s779] sm:$0x1]
        %v1068 = vlaneseq
        %v1069 = vshrl.u32 %v1068, 7
        %v1070 = vsub.s32 0, %v1069
        %v1071 = vrot.slane %v1066, %v1070
        %v1089 = vunpack.c.l.b16 %v1050
        %v1090 = vunpack.c.l.b16 %v1051
        %v1091 = vunpack.c.l.b16 %v1052
        %v1092 = vunpack.c.l.b16 %v1053
        %v1093 = vunpack.c.l.b16 %v1054
        %v1094 = vunpack.c.l.b16 %v1055
        %v1095 = vunpack.c.l.b16 %v1056
        %v1096 = vunpack.c.l.b16 %v1057
        %v1097 = vunpack.c.l.b16 %v1058
        %v1098 = vunpack.c.l.b16 %v1059
        %v1099 = vunpack.c.l.b16 %v1060
        %v1100 = vunpack.c.l.b16 %v1061
        %v1101 = vunpack.c.l.b16 %v1062
        %v1102 = vunpack.c.l.b16 %v1063
        %v1103 = vunpack.c.l.b16 %v1064
        %v1104 = vunpack.c.l.b16 %v1065
        %v1105 = vpack.c.b16 %v1090, %v1089
        %v1106 = vpack.c.b16 %v1092, %v1091
        %v1107 = vpack.c.b16 %v1094, %v1093
        %v1108 = vpack.c.b16 %v1096, %v1095
        %v1109 = vpack.c.b16 %v1098, %v1097
        %v1110 = vpack.c.b16 %v1100, %v1099
        %v1111 = vpack.c.b16 %v1102, %v1101
        %v1112 = vpack.c.b16 %v1104, %v1103
        %1121 = vmatprep.subr.bf16.mxu0 0
        %1122 = vmatpush1.bf16.msra.mxu0 %v1112
        %1123 = vmatprep.subr.bf16.mxu0 0
        %1124 = vmatpush1.bf16.msra.mxu0 %v1111
        %1125 = vmatprep.subr.bf16.mxu0 0
        %1126 = vmatpush1.bf16.msra.mxu0 %v1110
        %1127 = vmatprep.subr.bf16.mxu0 0
        %1128 = vmatpush1.bf16.msra.mxu0 %v1109
        %1129 = vmatprep.subr.bf16.mxu0 0
        %1130 = vmatpush1.bf16.msra.mxu0 %v1108
        %1131 = vmatprep.subr.bf16.mxu0 0
        %1132 = vmatpush1.bf16.msra.mxu0 %v1107
        %1133 = vmatprep.subr.bf16.mxu0 0
        %1134 = vmatpush1.bf16.msra.mxu0 %v1106
        %1135 = vmatprep.subr.bf16.mxu0 0
        %1136 = vmatpush1.bf16.msra.mxu0 %v1105
        %1137 = vmatprep.subr.bf16.mxu0 0
        %1138 = vmatpush2.bf16.msra.mxu0 0
        %1139 = vmatprep.subr.bf16.mxu0 0
        %1140 = vmatpush2.bf16.msra.mxu0 0
        %1141 = vmatprep.subr.bf16.mxu0 0
        %1142 = vmatpush2.bf16.msra.mxu0 0
        %1143 = vmatprep.subr.bf16.mxu0 0
        %1144 = vmatpush2.bf16.msra.mxu0 0
        %1145 = vmatprep.subr.bf16.mxu0 0
        %1146 = vmatpush2.bf16.msra.mxu0 0
        %1147 = vmatprep.subr.bf16.mxu0 0
        %1148 = vmatpush2.bf16.msra.mxu0 0
        %1149 = vmatprep.subr.bf16.mxu0 0
        %1150 = vmatpush2.bf16.msra.mxu0 0
        %1151 = vmatprep.subr.bf16.mxu0 0
        %1152 = vmatpush2.bf16.msra.mxu0 0
        %1153 = vmatprep.mubr.bf16.mxu0 0
        %1154 = vmatmul.mubr.bf16.gmra.mxu0 %v827
        %v1155 = vpop.f32.mrf.mxu0
        %v1156 = vadd.f32 %v1071, %v1155
        %v1157 = vpop.f32.mrf.mxu0
        %v1158 = vpop.f32.mrf.mxu0
        %v1159 = vpop.f32.mrf.mxu0
        %1160 = vdwg.mxu0
        %v1161 = vmul.f32 %v934, 0.35355338
        %v1162 = vpack.c.bf16 %v1161, %v1161
        %v1163 = vpack.c.bf16 %v1045, %v1045
        %v1164 = vpack.c.bf16 %v1156, %v1156
        %vm1165 = vcmask 64512
        %v1167 = vsel %vm1165, %v1162, 0
        %v1170 = vsel %vm1165, %v1163, 0
        %1172 = vmatprep.subr.bf16.mxu0 0
        %1173 = vmatpush1.bf16.xpose.msra.mxu0 0
        %1174 = vmatprep.subr.bf16.mxu0 0
        %1175 = vmatpush1.bf16.xpose.msra.mxu0 0
        %1176 = vmatprep.subr.bf16.mxu0 0
        %1177 = vmatpush1.bf16.xpose.msra.mxu0 0
        %1178 = vmatprep.subr.bf16.mxu0 0
        %1179 = vmatpush1.bf16.xpose.msra.mxu0 0
        %1180 = vmatprep.subr.bf16.mxu0 0
        %1181 = vmatpush1.bf16.xpose.msra.mxu0 0
        %1182 = vmatprep.subr.bf16.mxu0 0
        %1183 = vmatpush1.bf16.xpose.msra.mxu0 0
        %1184 = vmatprep.subr.bf16.mxu0 0
        %1185 = vmatpush1.bf16.xpose.msra.mxu0 0
        %1186 = vmatprep.subr.bf16.mxu0 0
        %1187 = vmatpush1.bf16.xpose.msra.mxu0 %v1170
        %1188 = vmatprep.subr.bf16.mxu0 0
        %1189 = vmatpush2.bf16.xpose.msra.mxu0 0
        %1190 = vmatprep.subr.bf16.mxu0 0
        %1191 = vmatpush2.bf16.xpose.msra.mxu0 0
        %1192 = vmatprep.subr.bf16.mxu0 0
        %1193 = vmatpush2.bf16.xpose.msra.mxu0 0
        %1194 = vmatprep.subr.bf16.mxu0 0
        %1195 = vmatpush2.bf16.xpose.msra.mxu0 0
        %1196 = vmatprep.subr.bf16.mxu0 0
        %1197 = vmatpush2.bf16.xpose.msra.mxu0 0
        %1198 = vmatprep.subr.bf16.mxu0 0
        %1199 = vmatpush2.bf16.xpose.msra.mxu0 0
        %1200 = vmatprep.subr.bf16.mxu0 0
        %1201 = vmatpush2.bf16.xpose.msra.mxu0 0
        %1202 = vmatprep.subr.bf16.mxu0 0
        %1203 = vmatpush2.bf16.xpose.msra.mxu0 0
        %1204 = vmatprep.mubr.bf16.mxu0 0
        %1205 = vmatmul.mubr.bf16.gmra.mxu0 %v1167
        %v1206 = vpop.f32.mrf.mxu0
        %v1207 = vadd.f32 0.0, %v1206
        %v1208 = vpop.f32.mrf.mxu0
        %v1209 = vpop.f32.mrf.mxu0
        %v1210 = vpop.f32.mrf.mxu0
        %1211 = vdwg.mxu0
        %v1212 = vsel %vm1165, %v1207, -inf
        %1213 = vmax.xlane.f32.xlu0 %v1212
        %v1214 = vpop.xlane.xlu0 %1213
        %v1215 = vsub.f32 %v1207, %v1214
        %v1216 = vmul.f32 %v1215, 1.442695
        %v1217 = vpow.pop %v1216
        %v1218 = vsel %vm1165, %v1217, 0.0
        %1219 = vadd.xlane.f32.xlu0 %v1218
        %v1220 = vpop.xlane.xlu0 %1219
        %v1221 = vrcp.pop %v1220
        %v1222 = vmul.f32 %v1217, %v1221
        %v1223 = vpack.c.bf16 %v1222, %v1222
        %v1225 = vsel %vm1165, %v1223, 0
        %vm1227 = vcmask 1043456
        %v1229 = vsel %vm1227, %v1164, 0
        %1231 = vmatprep.subr.bf16.mxu0 0
        %1232 = vmatpush1.bf16.msra.mxu0 0
        %1233 = vmatprep.subr.bf16.mxu0 0
        %1234 = vmatpush1.bf16.msra.mxu0 0
        %1235 = vmatprep.subr.bf16.mxu0 0
        %1236 = vmatpush1.bf16.msra.mxu0 0
        %1237 = vmatprep.subr.bf16.mxu0 0
        %1238 = vmatpush1.bf16.msra.mxu0 0
        %1239 = vmatprep.subr.bf16.mxu0 0
        %1240 = vmatpush1.bf16.msra.mxu0 0
        %1241 = vmatprep.subr.bf16.mxu0 0
        %1242 = vmatpush1.bf16.msra.mxu0 0
        %1243 = vmatprep.subr.bf16.mxu0 0
        %1244 = vmatpush1.bf16.msra.mxu0 0
        %1245 = vmatprep.subr.bf16.mxu0 0
        %1246 = vmatpush1.bf16.msra.mxu0 %v1229
        %1247 = vmatprep.subr.bf16.mxu0 0
        %1248 = vmatpush2.bf16.msra.mxu0 0
        %1249 = vmatprep.subr.bf16.mxu0 0
        %1250 = vmatpush2.bf16.msra.mxu0 0
        %1251 = vmatprep.subr.bf16.mxu0 0
        %1252 = vmatpush2.bf16.msra.mxu0 0
        %1253 = vmatprep.subr.bf16.mxu0 0
        %1254 = vmatpush2.bf16.msra.mxu0 0
        %1255 = vmatprep.subr.bf16.mxu0 0
        %1256 = vmatpush2.bf16.msra.mxu0 0
        %1257 = vmatprep.subr.bf16.mxu0 0
        %1258 = vmatpush2.bf16.msra.mxu0 0
        %1259 = vmatprep.subr.bf16.mxu0 0
        %1260 = vmatpush2.bf16.msra.mxu0 0
        %1261 = vmatprep.subr.bf16.mxu0 0
        %1262 = vmatpush2.bf16.msra.mxu0 0
        %1263 = vmatprep.mubr.bf16.mxu0 0
        %1264 = vmatmul.mubr.bf16.gmra.mxu0 %v1225
        %v1265 = vpop.f32.mrf.mxu0
        %v1266 = vadd.f32 0.0, %v1265
        %v1267 = vpop.f32.mrf.mxu0
        %v1268 = vpop.f32.mrf.mxu0
        %v1269 = vpop.f32.mrf.mxu0
        %1270 = vdwg.mxu0
        %v1271 = vpack.c.bf16 %v1266, %v1266
        %vm1272 = vcmask 60416
        %1273 = vst.msk [vmem:[#allocation3] sm:$0xf] %vm1272, %v1271
        %1275 = vrot.lane.b32.xlu0 %v1162, 120
        %v1276 = vpop.permute.xlu0 %1275
        %1278 = vrot.lane.b32.xlu0 %v1163, 120
        %v1279 = vpop.permute.xlu0 %1278
        %v1281 = vsel %vm1165, %v1276, 0
        %v1284 = vsel %vm1165, %v1279, 0
        %1286 = vmatprep.subr.bf16.mxu0 0
        %1287 = vmatpush1.bf16.xpose.msra.mxu0 0
        %1288 = vmatprep.subr.bf16.mxu0 0
        %1289 = vmatpush1.bf16.xpose.msra.mxu0 0
        %1290 = vmatprep.subr.bf16.mxu0 0
        %1291 = vmatpush1.bf16.xpose.msra.mxu0 0
        %1292 = vmatprep.subr.bf16.mxu0 0
        %1293 = vmatpush1.bf16.xpose.msra.mxu0 0
        %1294 = vmatprep.subr.bf16.mxu0 0
        %1295 = vmatpush1.bf16.xpose.msra.mxu0 0
        %1296 = vmatprep.subr.bf16.mxu0 0
        %1297 = vmatpush1.bf16.xpose.msra.mxu0 0
        %1298 = vmatprep.subr.bf16.mxu0 0
        %1299 = vmatpush1.bf16.xpose.msra.mxu0 0
        %1300 = vmatprep.subr.bf16.mxu0 0
        %1301 = vmatpush1.bf16.xpose.msra.mxu0 %v1284
        %1302 = vmatprep.subr.bf16.mxu0 0
        %1303 = vmatpush2.bf16.xpose.msra.mxu0 0
        %1304 = vmatprep.subr.bf16.mxu0 0
        %1305 = vmatpush2.bf16.xpose.msra.mxu0 0
        %1306 = vmatprep.subr.bf16.mxu0 0
        %1307 = vmatpush2.bf16.xpose.msra.mxu0 0
        %1308 = vmatprep.subr.bf16.mxu0 0
        %1309 = vmatpush2.bf16.xpose.msra.mxu0 0
        %1310 = vmatprep.subr.bf16.mxu0 0
        %1311 = vmatpush2.bf16.xpose.msra.mxu0 0
        %1312 = vmatprep.subr.bf16.mxu0 0
        %1313 = vmatpush2.bf16.xpose.msra.mxu0 0
        %1314 = vmatprep.subr.bf16.mxu0 0
        %1315 = vmatpush2.bf16.xpose.msra.mxu0 0
        %1316 = vmatprep.subr.bf16.mxu0 0
        %1317 = vmatpush2.bf16.xpose.msra.mxu0 0
        %1318 = vmatprep.mubr.bf16.mxu0 0
        %1319 = vmatmul.mubr.bf16.gmra.mxu0 %v1281
        %v1320 = vpop.f32.mrf.mxu0
        %v1321 = vadd.f32 0.0, %v1320
        %v1322 = vpop.f32.mrf.mxu0
        %v1323 = vpop.f32.mrf.mxu0
        %v1324 = vpop.f32.mrf.mxu0
        %1325 = vdwg.mxu0
        %v1326 = vsel %vm1165, %v1321, -inf
        %1327 = vmax.xlane.f32.xlu0 %v1326
        %v1328 = vpop.xlane.xlu0 %1327
        %v1329 = vsub.f32 %v1321, %v1328
        %v1330 = vmul.f32 %v1329, 1.442695
        %v1331 = vpow.pop %v1330
        %v1332 = vsel %vm1165, %v1331, 0.0
        %1333 = vadd.xlane.f32.xlu0 %v1332
        %v1334 = vpop.xlane.xlu0 %1333
        %v1335 = vrcp.pop %v1334
        %v1336 = vmul.f32 %v1331, %v1335
        %v1337 = vpack.c.bf16 %v1336, %v1336
        %1339 = vrot.lane.b32.xlu0 %v1164, 120
        %v1340 = vpop.permute.xlu0 %1339
        %v1342 = vsel %vm1165, %v1337, 0
        %v1345 = vsel %vm1227, %v1340, 0
        %1347 = vmatprep.subr.bf16.mxu0 0
        %1348 = vmatpush1.bf16.msra.mxu0 0
        %1349 = vmatprep.subr.bf16.mxu0 0
        %1350 = vmatpush1.bf16.msra.mxu0 0
        %1351 = vmatprep.subr.bf16.mxu0 0
        %1352 = vmatpush1.bf16.msra.mxu0 0
        %1353 = vmatprep.subr.bf16.mxu0 0
        %1354 = vmatpush1.bf16.msra.mxu0 0
        %1355 = vmatprep.subr.bf16.mxu0 0
        %1356 = vmatpush1.bf16.msra.mxu0 0
        %1357 = vmatprep.subr.bf16.mxu0 0
        %1358 = vmatpush1.bf16.msra.mxu0 0
        %1359 = vmatprep.subr.bf16.mxu0 0
        %1360 = vmatpush1.bf16.msra.mxu0 0
        %1361 = vmatprep.subr.bf16.mxu0 0
        %1362 = vmatpush1.bf16.msra.mxu0 %v1345
        %1363 = vmatprep.subr.bf16.mxu0 0
        %1364 = vmatpush2.bf16.msra.mxu0 0
        %1365 = vmatprep.subr.bf16.mxu0 0
        %1366 = vmatpush2.bf16.msra.mxu0 0
        %1367 = vmatprep.subr.bf16.mxu0 0
        %1368 = vmatpush2.bf16.msra.mxu0 0
        %1369 = vmatprep.subr.bf16.mxu0 0
        %1370 = vmatpush2.bf16.msra.mxu0 0
        %1371 = vmatprep.subr.bf16.mxu0 0
        %1372 = vmatpush2.bf16.msra.mxu0 0
        %1373 = vmatprep.subr.bf16.mxu0 0
        %1374 = vmatpush2.bf16.msra.mxu0 0
        %1375 = vmatprep.subr.bf16.mxu0 0
        %1376 = vmatpush2.bf16.msra.mxu0 0
        %1377 = vmatprep.subr.bf16.mxu0 0
        %1378 = vmatpush2.bf16.msra.mxu0 0
        %1379 = vmatprep.mubr.bf16.mxu0 0
        %1380 = vmatmul.mubr.bf16.gmra.mxu0 %v1342
        %v1381 = vpop.f32.mrf.mxu0
        %v1382 = vadd.f32 0.0, %v1381
        %v1383 = vpop.f32.mrf.mxu0
        %v1384 = vpop.f32.mrf.mxu0
        %v1385 = vpop.f32.mrf.mxu0
        %1386 = vdwg.mxu0
        %v1387 = vpack.c.bf16 %v1382, %v1382
        %v1389 = vunpack.c.l.b16 %v1387
        %v1390 = vpack.c.b16 %v1389, %v1389
        %1391 = vrot.lane.b32.xlu0 %v1390, 8
        %v1392 = vpop.permute.xlu0 %1391
        %vm1394 = vcmask 126016
        %1395 = vst.msk [vmem:[#allocation3] sm:$0xf] %vm1394, %v1392
        %1396 = vrot.lane.b32.xlu0 %v1162, 112
        %v1397 = vpop.permute.xlu0 %1396
        %1398 = vrot.lane.b32.xlu0 %v1163, 112
        %v1399 = vpop.permute.xlu0 %1398
        %v1401 = vsel %vm1165, %v1397, 0
        %v1404 = vsel %vm1165, %v1399, 0
        %1406 = vmatprep.subr.bf16.mxu0 0
        %1407 = vmatpush1.bf16.xpose.msra.mxu0 0
        %1408 = vmatprep.subr.bf16.mxu0 0
        %1409 = vmatpush1.bf16.xpose.msra.mxu0 0
        %1410 = vmatprep.subr.bf16.mxu0 0
        %1411 = vmatpush1.bf16.xpose.msra.mxu0 0
        %1412 = vmatprep.subr.bf16.mxu0 0
        %1413 = vmatpush1.bf16.xpose.msra.mxu0 0
        %1414 = vmatprep.subr.bf16.mxu0 0
        %1415 = vmatpush1.bf16.xpose.msra.mxu0 0
        %1416 = vmatprep.subr.bf16.mxu0 0
        %1417 = vmatpush1.bf16.xpose.msra.mxu0 0
        %1418 = vmatprep.subr.bf16.mxu0 0
        %1419 = vmatpush1.bf16.xpose.msra.mxu0 0
        %1420 = vmatprep.subr.bf16.mxu0 0
        %1421 = vmatpush1.bf16.xpose.msra.mxu0 %v1404
        %1422 = vmatprep.subr.bf16.mxu0 0
        %1423 = vmatpush2.bf16.xpose.msra.mxu0 0
        %1424 = vmatprep.subr.bf16.mxu0 0
        %1425 = vmatpush2.bf16.xpose.msra.mxu0 0
        %1426 = vmatprep.subr.bf16.mxu0 0
        %1427 = vmatpush2.bf16.xpose.msra.mxu0 0
        %1428 = vmatprep.subr.bf16.mxu0 0
        %1429 = vmatpush2.bf16.xpose.msra.mxu0 0
        %1430 = vmatprep.subr.bf16.mxu0 0
        %1431 = vmatpush2.bf16.xpose.msra.mxu0 0
        %1432 = vmatprep.subr.bf16.mxu0 0
        %1433 = vmatpush2.bf16.xpose.msra.mxu0 0
        %1434 = vmatprep.subr.bf16.mxu0 0
        %1435 = vmatpush2.bf16.xpose.msra.mxu0 0
        %1436 = vmatprep.subr.bf16.mxu0 0
        %1437 = vmatpush2.bf16.xpose.msra.mxu0 0
        %1438 = vmatprep.mubr.bf16.mxu0 0
        %1439 = vmatmul.mubr.bf16.gmra.mxu0 %v1401
        %v1440 = vpop.f32.mrf.mxu0
        %v1441 = vadd.f32 0.0, %v1440
        %v1442 = vpop.f32.mrf.mxu0
        %v1443 = vpop.f32.mrf.mxu0
        %v1444 = vpop.f32.mrf.mxu0
        %1445 = vdwg.mxu0
        %v1446 = vsel %vm1165, %v1441, -inf
        %1447 = vmax.xlane.f32.xlu0 %v1446
        %v1448 = vpop.xlane.xlu0 %1447
        %v1449 = vsub.f32 %v1441, %v1448
        %v1450 = vmul.f32 %v1449, 1.442695
        %v1451 = vpow.pop %v1450
        %v1452 = vsel %vm1165, %v1451, 0.0
        %1453 = vadd.xlane.f32.xlu0 %v1452
        %v1454 = vpop.xlane.xlu0 %1453
        %v1455 = vrcp.pop %v1454
        %v1456 = vmul.f32 %v1451, %v1455
        %v1457 = vpack.c.bf16 %v1456, %v1456
        %1458 = vrot.lane.b32.xlu0 %v1164, 112
        %v1459 = vpop.permute.xlu0 %1458
        %v1461 = vsel %vm1165, %v1457, 0
        %v1464 = vsel %vm1227, %v1459, 0
        %1466 = vmatprep.subr.bf16.mxu0 0
        %1467 = vmatpush1.bf16.msra.mxu0 0
        %1468 = vmatprep.subr.bf16.mxu0 0
        %1469 = vmatpush1.bf16.msra.mxu0 0
        %1470 = vmatprep.subr.bf16.mxu0 0
        %1471 = vmatpush1.bf16.msra.mxu0 0
        %1472 = vmatprep.subr.bf16.mxu0 0
        %1473 = vmatpush1.bf16.msra.mxu0 0
        %1474 = vmatprep.subr.bf16.mxu0 0
        %1475 = vmatpush1.bf16.msra.mxu0 0
        %1476 = vmatprep.subr.bf16.mxu0 0
        %1477 = vmatpush1.bf16.msra.mxu0 0
        %1478 = vmatprep.subr.bf16.mxu0 0
        %1479 = vmatpush1.bf16.msra.mxu0 0
        %1480 = vmatprep.subr.bf16.mxu0 0
        %1481 = vmatpush1.bf16.msra.mxu0 %v1464
        %1482 = vmatprep.subr.bf16.mxu0 0
        %1483 = vmatpush2.bf16.msra.mxu0 0
        %1484 = vmatprep.subr.bf16.mxu0 0
        %1485 = vmatpush2.bf16.msra.mxu0 0
        %1486 = vmatprep.subr.bf16.mxu0 0
        %1487 = vmatpush2.bf16.msra.mxu0 0
        %1488 = vmatprep.subr.bf16.mxu0 0
        %1489 = vmatpush2.bf16.msra.mxu0 0
        %1490 = vmatprep.subr.bf16.mxu0 0
        %1491 = vmatpush2.bf16.msra.mxu0 0
        %1492 = vmatprep.subr.bf16.mxu0 0
        %1493 = vmatpush2.bf16.msra.mxu0 0
        %1494 = vmatprep.subr.bf16.mxu0 0
        %1495 = vmatpush2.bf16.msra.mxu0 0
        %1496 = vmatprep.subr.bf16.mxu0 0
        %1497 = vmatpush2.bf16.msra.mxu0 0
        %1498 = vmatprep.mubr.bf16.mxu0 0
        %1499 = vmatmul.mubr.bf16.gmra.mxu0 %v1461
        %v1500 = vpop.f32.mrf.mxu0
        %v1501 = vadd.f32 0.0, %v1500
        %v1502 = vpop.f32.mrf.mxu0
        %v1503 = vpop.f32.mrf.mxu0
        %v1504 = vpop.f32.mrf.mxu0
        %1505 = vdwg.mxu0
        %v1506 = vpack.c.bf16 %v1501, %v1501
        %v1508 = vunpack.c.l.b16 %v1506
        %v1509 = vpack.c.b16 %v1508, %v1508
        %1510 = vrot.lane.b32.xlu0 %v1509, 16
        %v1511 = vpop.permute.xlu0 %1510
        %vm1513 = vcmask 191616
        %1514 = vst.msk [vmem:[#allocation3] sm:$0xf] %vm1513, %v1511
        %1515 = vrot.lane.b32.xlu0 %v1162, 104
        %v1516 = vpop.permute.xlu0 %1515
        %1517 = vrot.lane.b32.xlu0 %v1163, 104
        %v1518 = vpop.permute.xlu0 %1517
        %v1520 = vsel %vm1165, %v1516, 0
        %v1523 = vsel %vm1165, %v1518, 0
        %1525 = vmatprep.subr.bf16.mxu0 0
        %1526 = vmatpush1.bf16.xpose.msra.mxu0 0
        %1527 = vmatprep.subr.bf16.mxu0 0
        %1528 = vmatpush1.bf16.xpose.msra.mxu0 0
        %1529 = vmatprep.subr.bf16.mxu0 0
        %1530 = vmatpush1.bf16.xpose.msra.mxu0 0
        %1531 = vmatprep.subr.bf16.mxu0 0
        %1532 = vmatpush1.bf16.xpose.msra.mxu0 0
        %1533 = vmatprep.subr.bf16.mxu0 0
        %1534 = vmatpush1.bf16.xpose.msra.mxu0 0
        %1535 = vmatprep.subr.bf16.mxu0 0
        %1536 = vmatpush1.bf16.xpose.msra.mxu0 0
        %1537 = vmatprep.subr.bf16.mxu0 0
        %1538 = vmatpush1.bf16.xpose.msra.mxu0 0
        %1539 = vmatprep.subr.bf16.mxu0 0
        %1540 = vmatpush1.bf16.xpose.msra.mxu0 %v1523
        %1541 = vmatprep.subr.bf16.mxu0 0
        %1542 = vmatpush2.bf16.xpose.msra.mxu0 0
        %1543 = vmatprep.subr.bf16.mxu0 0
        %1544 = vmatpush2.bf16.xpose.msra.mxu0 0
        %1545 = vmatprep.subr.bf16.mxu0 0
        %1546 = vmatpush2.bf16.xpose.msra.mxu0 0
        %1547 = vmatprep.subr.bf16.mxu0 0
        %1548 = vmatpush2.bf16.xpose.msra.mxu0 0
        %1549 = vmatprep.subr.bf16.mxu0 0
        %1550 = vmatpush2.bf16.xpose.msra.mxu0 0
        %1551 = vmatprep.subr.bf16.mxu0 0
        %1552 = vmatpush2.bf16.xpose.msra.mxu0 0
        %1553 = vmatprep.subr.bf16.mxu0 0
        %1554 = vmatpush2.bf16.xpose.msra.mxu0 0
        %1555 = vmatprep.subr.bf16.mxu0 0
        %1556 = vmatpush2.bf16.xpose.msra.mxu0 0
        %1557 = vmatprep.mubr.bf16.mxu0 0
        %1558 = vmatmul.mubr.bf16.gmra.mxu0 %v1520
        %v1559 = vpop.f32.mrf.mxu0
        %v1560 = vadd.f32 0.0, %v1559
        %v1561 = vpop.f32.mrf.mxu0
        %v1562 = vpop.f32.mrf.mxu0
        %v1563 = vpop.f32.mrf.mxu0
        %1564 = vdwg.mxu0
        %v1565 = vsel %vm1165, %v1560, -inf
        %1566 = vmax.xlane.f32.xlu0 %v1565
        %v1567 = vpop.xlane.xlu0 %1566
        %v1568 = vsub.f32 %v1560, %v1567
        %v1569 = vmul.f32 %v1568, 1.442695
        %v1570 = vpow.pop %v1569
        %v1571 = vsel %vm1165, %v1570, 0.0
        %1572 = vadd.xlane.f32.xlu0 %v1571
        %v1573 = vpop.xlane.xlu0 %1572
        %v1574 = vrcp.pop %v1573
        %v1575 = vmul.f32 %v1570, %v1574
        %v1576 = vpack.c.bf16 %v1575, %v1575
        %1577 = vrot.lane.b32.xlu0 %v1164, 104
        %v1578 = vpop.permute.xlu0 %1577
        %v1580 = vsel %vm1165, %v1576, 0
        %v1583 = vsel %vm1227, %v1578, 0
        %1585 = vmatprep.subr.bf16.mxu0 0
        %1586 = vmatpush1.bf16.msra.mxu0 0
        %1587 = vmatprep.subr.bf16.mxu0 0
        %1588 = vmatpush1.bf16.msra.mxu0 0
        %1589 = vmatprep.subr.bf16.mxu0 0
        %1590 = vmatpush1.bf16.msra.mxu0 0
        %1591 = vmatprep.subr.bf16.mxu0 0
        %1592 = vmatpush1.bf16.msra.mxu0 0
        %1593 = vmatprep.subr.bf16.mxu0 0
        %1594 = vmatpush1.bf16.msra.mxu0 0
        %1595 = vmatprep.subr.bf16.mxu0 0
        %1596 = vmatpush1.bf16.msra.mxu0 0
        %1597 = vmatprep.subr.bf16.mxu0 0
        %1598 = vmatpush1.bf16.msra.mxu0 0
        %1599 = vmatprep.subr.bf16.mxu0 0
        %1600 = vmatpush1.bf16.msra.mxu0 %v1583
        %1601 = vmatprep.subr.bf16.mxu0 0
        %1602 = vmatpush2.bf16.msra.mxu0 0
        %1603 = vmatprep.subr.bf16.mxu0 0
        %1604 = vmatpush2.bf16.msra.mxu0 0
        %1605 = vmatprep.subr.bf16.mxu0 0
        %1606 = vmatpush2.bf16.msra.mxu0 0
        %1607 = vmatprep.subr.bf16.mxu0 0
        %1608 = vmatpush2.bf16.msra.mxu0 0
        %1609 = vmatprep.subr.bf16.mxu0 0
        %1610 = vmatpush2.bf16.msra.mxu0 0
        %1611 = vmatprep.subr.bf16.mxu0 0
        %1612 = vmatpush2.bf16.msra.mxu0 0
        %1613 = vmatprep.subr.bf16.mxu0 0
        %1614 = vmatpush2.bf16.msra.mxu0 0
        %1615 = vmatprep.subr.bf16.mxu0 0
        %1616 = vmatpush2.bf16.msra.mxu0 0
        %1617 = vmatprep.mubr.bf16.mxu0 0
        %1618 = vmatmul.mubr.bf16.gmra.mxu0 %v1580
        %v1619 = vpop.f32.mrf.mxu0
        %v1620 = vadd.f32 0.0, %v1619
        %v1621 = vpop.f32.mrf.mxu0
        %v1622 = vpop.f32.mrf.mxu0
        %v1623 = vpop.f32.mrf.mxu0
        %1624 = vdwg.mxu0
        %v1625 = vpack.c.bf16 %v1620, %v1620
        %v1627 = vunpack.c.l.b16 %v1625
        %v1628 = vpack.c.b16 %v1627, %v1627
        %1629 = vrot.lane.b32.xlu0 %v1628, 24
        %v1630 = vpop.permute.xlu0 %1629
        %vm1632 = vcmask 257216
        %1633 = vst.msk [vmem:[#allocation3] sm:$0xf] %vm1632, %v1630
        %v1634 = vld [vmem:[#allocation3] sm:$0xf]
        %v1635 = vld [vmem:[%s784] sm:$0xf]
        %v1636 = vld [vmem:[%s784 + $0x4] sm:$0xf]
        %v1637 = vld [vmem:[%s784 + $0x8] sm:$0xf]
        %v1638 = vld [vmem:[%s784 + $0xc] sm:$0xf]
        %v1639 = vld [vmem:[%s787] sm:$0x1]
        %v1641 = vlaneseq
        %v1642 = vshrl.u32 %v1641, 7
        %v1643 = vsub.s32 0, %v1642
        %v1644 = vrot.slane %v1639, %v1643
        %v1650 = vunpack.c.l.b16 %v1635
        %v1651 = vunpack.c.l.b16 %v1636
        %v1652 = vunpack.c.l.b16 %v1637
        %v1653 = vunpack.c.l.b16 %v1638
        %v1654 = vpack.c.b16 %v1651, %v1650
        %v1655 = vpack.c.b16 %v1653, %v1652
        %vm1658 = vcmask 261120
        %v1660 = vsel %vm1658, %v1634, 0
        %1662 = vmatprep.subr.bf16.mxu0 0
        %1663 = vmatpush1.bf16.msra.mxu0 0
        %1664 = vmatprep.subr.bf16.mxu0 0
        %1665 = vmatpush1.bf16.msra.mxu0 0
        %1666 = vmatprep.subr.bf16.mxu0 0
        %1667 = vmatpush1.bf16.msra.mxu0 0
        %1668 = vmatprep.subr.bf16.mxu0 0
        %1669 = vmatpush1.bf16.msra.mxu0 0
        %1670 = vmatprep.subr.bf16.mxu0 0
        %1671 = vmatpush1.bf16.msra.mxu0 0
        %1672 = vmatprep.subr.bf16.mxu0 0
        %1673 = vmatpush1.bf16.msra.mxu0 0
        %1674 = vmatprep.subr.bf16.mxu0 0
        %1675 = vmatpush1.bf16.msra.mxu0 %v1655
        %1676 = vmatprep.subr.bf16.mxu0 0
        %1677 = vmatpush1.bf16.msra.mxu0 %v1654
        %1678 = vmatprep.subr.bf16.mxu0 0
        %1679 = vmatpush2.bf16.msra.mxu0 0
        %1680 = vmatprep.subr.bf16.mxu0 0
        %1681 = vmatpush2.bf16.msra.mxu0 0
        %1682 = vmatprep.subr.bf16.mxu0 0
        %1683 = vmatpush2.bf16.msra.mxu0 0
        %1684 = vmatprep.subr.bf16.mxu0 0
        %1685 = vmatpush2.bf16.msra.mxu0 0
        %1686 = vmatprep.subr.bf16.mxu0 0
        %1687 = vmatpush2.bf16.msra.mxu0 0
        %1688 = vmatprep.subr.bf16.mxu0 0
        %1689 = vmatpush2.bf16.msra.mxu0 0
        %1690 = vmatprep.subr.bf16.mxu0 0
        %1691 = vmatpush2.bf16.msra.mxu0 0
        %1692 = vmatprep.subr.bf16.mxu0 0
        %1693 = vmatpush2.bf16.msra.mxu0 0
        %1694 = vmatprep.mubr.bf16.mxu0 0
        %1695 = vmatmul.mubr.bf16.gmra.mxu0 %v1660
        %v1696 = vpop.f32.mrf.mxu0
        %v1697 = vadd.f32 %v1644, %v1696
        %v1698 = vpop.f32.mrf.mxu0
        %v1699 = vpop.f32.mrf.mxu0
        %v1700 = vpop.f32.mrf.mxu0
        %1701 = vdwg.mxu0
        %v1702 = vadd.f32 %v823, %v1697
        %v1703 = vld [vmem:[%s790] sm:$0x1]
        %v1704 = vld [vmem:[%s793] sm:$0x1]
        %1705 = vadd.xlane.f32.xlu0 %v1702
        %v1706 = vpop.xlane.xlu0 %1705
        %v1707 = vmul.f32 %v1706, 0.03125
        %v1708 = vsub.f32 %v1702, %v1707
        %v1709 = vsel %vm826, %v1708, 0.0
        %v1710 = vmul.f32 %v1709, %v1709
        %1711 = vadd.xlane.f32.xlu0 %v1710
        %v1712 = vpop.xlane.xlu0 %1711
        %v1713 = vmul.f32 %v1712, 0.03125
        %v1714 = vadd.f32 %v1713, 1e-05
        %v1715 = vrsqrt.pop %v1714
        %v1716 = vmul.f32 %v1709, %v1715
        %v1718 = vlaneseq
        %v1719 = vshrl.u32 %v1718, 7
        %v1720 = vsub.s32 0, %v1719
        %v1721 = vrot.slane %v1703, %v1720
        %v1723 = vmul.f32 %v1716, %v1721
        %v1725 = vlaneseq
        %v1726 = vshrl.u32 %v1725, 7
        %v1727 = vsub.s32 0, %v1726
        %v1728 = vrot.slane %v1704, %v1727
        %v1730 = vadd.f32 %v1723, %v1728
        %v1731 = vpack.c.bf16 %v1730, %v1730
        %v1732 = vld [vmem:[%s798] sm:$0xf]
        %v1733 = vld [vmem:[%s798 + $0x4] sm:$0xf]
        %v1734 = vld [vmem:[%s798 + $0x8] sm:$0xf]
        %v1735 = vld [vmem:[%s798 + $0xc] sm:$0xf]
        %v1736 = vld [vmem:[%s798 + $0x10] sm:$0xf]
        %v1737 = vld [vmem:[%s798 + $0x14] sm:$0xf]
        %v1738 = vld [vmem:[%s798 + $0x18] sm:$0xf]
        %v1739 = vld [vmem:[%s798 + $0x1c] sm:$0xf]
        %v1740 = vld [vmem:[%s798 + $0x20] sm:$0xf]
        %v1741 = vld [vmem:[%s798 + $0x24] sm:$0xf]
        %v1742 = vld [vmem:[%s798 + $0x28] sm:$0xf]
        %v1743 = vld [vmem:[%s798 + $0x2c] sm:$0xf]
        %v1744 = vld [vmem:[%s798 + $0x30] sm:$0xf]
        %v1745 = vld [vmem:[%s798 + $0x34] sm:$0xf]
        %v1746 = vld [vmem:[%s798 + $0x38] sm:$0xf]
        %v1747 = vld [vmem:[%s798 + $0x3c] sm:$0xf]
        %v1748 = vld [vmem:[%s801] sm:$0x1]
        %v1750 = vlaneseq
        %v1751 = vshrl.u32 %v1750, 7
        %v1752 = vsub.s32 0, %v1751
        %v1753 = vrot.slane %v1748, %v1752
        %v1771 = vunpack.c.l.b16 %v1732
        %v1772 = vunpack.c.l.b16 %v1733
        %v1773 = vunpack.c.l.b16 %v1734
        %v1774 = vunpack.c.l.b16 %v1735
        %v1775 = vunpack.c.l.b16 %v1736
        %v1776 = vunpack.c.l.b16 %v1737
        %v1777 = vunpack.c.l.b16 %v1738
        %v1778 = vunpack.c.l.b16 %v1739
        %v1779 = vunpack.c.l.b16 %v1740
        %v1780 = vunpack.c.l.b16 %v1741
        %v1781 = vunpack.c.l.b16 %v1742
        %v1782 = vunpack.c.l.b16 %v1743
        %v1783 = vunpack.c.l.b16 %v1744
        %v1784 = vunpack.c.l.b16 %v1745
        %v1785 = vunpack.c.l.b16 %v1746
        %v1786 = vunpack.c.l.b16 %v1747
        %v1787 = vpack.c.b16 %v1772, %v1771
        %v1788 = vpack.c.b16 %v1774, %v1773
        %v1789 = vpack.c.b16 %v1776, %v1775
        %v1790 = vpack.c.b16 %v1778, %v1777
        %v1791 = vpack.c.b16 %v1780, %v1779
        %v1792 = vpack.c.b16 %v1782, %v1781
        %v1793 = vpack.c.b16 %v1784, %v1783
        %v1794 = vpack.c.b16 %v1786, %v1785
        %1803 = vmatprep.subr.bf16.mxu0 0
        %1804 = vmatpush1.bf16.msra.mxu0 %v1794
        %1805 = vmatprep.subr.bf16.mxu0 0
        %1806 = vmatpush1.bf16.msra.mxu0 %v1793
        %1807 = vmatprep.subr.bf16.mxu0 0
        %1808 = vmatpush1.bf16.msra.mxu0 %v1792
        %1809 = vmatprep.subr.bf16.mxu0 0
        %1810 = vmatpush1.bf16.msra.mxu0 %v1791
        %1811 = vmatprep.subr.bf16.mxu0 0
        %1812 = vmatpush1.bf16.msra.mxu0 %v1790
        %1813 = vmatprep.subr.bf16.mxu0 0
        %1814 = vmatpush1.bf16.msra.mxu0 %v1789
        %1815 = vmatprep.subr.bf16.mxu0 0
        %1816 = vmatpush1.bf16.msra.mxu0 %v1788
        %1817 = vmatprep.subr.bf16.mxu0 0
        %1818 = vmatpush1.bf16.msra.mxu0 %v1787
        %1819 = vmatprep.subr.bf16.mxu0 0
        %1820 = vmatpush2.bf16.msra.mxu0 0
        %1821 = vmatprep.subr.bf16.mxu0 0
        %1822 = vmatpush2.bf16.msra.mxu0 0
        %1823 = vmatprep.subr.bf16.mxu0 0
        %1824 = vmatpush2.bf16.msra.mxu0 0
        %1825 = vmatprep.subr.bf16.mxu0 0
        %1826 = vmatpush2.bf16.msra.mxu0 0
        %1827 = vmatprep.subr.bf16.mxu0 0
        %1828 = vmatpush2.bf16.msra.mxu0 0
        %1829 = vmatprep.subr.bf16.mxu0 0
        %1830 = vmatpush2.bf16.msra.mxu0 0
        %1831 = vmatprep.subr.bf16.mxu0 0
        %1832 = vmatpush2.bf16.msra.mxu0 0
        %1833 = vmatprep.subr.bf16.mxu0 0
        %1834 = vmatpush2.bf16.msra.mxu0 0
        %1835 = vmatprep.mubr.bf16.mxu0 0
        %1836 = vmatmul.mubr.bf16.gmra.mxu0 %v1731
        %v1837 = vpop.f32.mrf.mxu0
        %v1838 = vadd.f32 %v1753, %v1837
        %v1839 = vpop.f32.mrf.mxu0
        %v1840 = vpop.f32.mrf.mxu0
        %v1841 = vpop.f32.mrf.mxu0
        %1842 = vdwg.mxu0
        %v1843 = vmax.f32 %v1838, 0.0
        %v1844 = vpack.c.bf16 %v1843, %v1843
        %v1845 = vld [vmem:[%s806] sm:$0xf]
        %v1846 = vld [vmem:[%s806 + $0x4] sm:$0xf]
        %v1847 = vld [vmem:[%s806 + $0x8] sm:$0xf]
        %v1848 = vld [vmem:[%s806 + $0xc] sm:$0xf]
        %v1849 = vld [vmem:[%s806 + $0x10] sm:$0xf]
        %v1850 = vld [vmem:[%s806 + $0x14] sm:$0xf]
        %v1851 = vld [vmem:[%s806 + $0x18] sm:$0xf]
        %v1852 = vld [vmem:[%s806 + $0x1c] sm:$0xf]
        %v1853 = vld [vmem:[%s806 + $0x20] sm:$0xf]
        %v1854 = vld [vmem:[%s806 + $0x24] sm:$0xf]
        %v1855 = vld [vmem:[%s806 + $0x28] sm:$0xf]
        %v1856 = vld [vmem:[%s806 + $0x2c] sm:$0xf]
        %v1857 = vld [vmem:[%s806 + $0x30] sm:$0xf]
        %v1858 = vld [vmem:[%s806 + $0x34] sm:$0xf]
        %v1859 = vld [vmem:[%s806 + $0x38] sm:$0xf]
        %v1860 = vld [vmem:[%s806 + $0x3c] sm:$0xf]
        %v1861 = vld [vmem:[%s809] sm:$0x1]
        %v1863 = vlaneseq
        %v1864 = vshrl.u32 %v1863, 7
        %v1865 = vsub.s32 0, %v1864
        %v1866 = vrot.slane %v1861, %v1865
        %v1884 = vunpack.c.l.b16 %v1845
        %v1885 = vunpack.c.l.b16 %v1846
        %v1886 = vunpack.c.l.b16 %v1847
        %v1887 = vunpack.c.l.b16 %v1848
        %v1888 = vunpack.c.l.b16 %v1849
        %v1889 = vunpack.c.l.b16 %v1850
        %v1890 = vunpack.c.l.b16 %v1851
        %v1891 = vunpack.c.l.b16 %v1852
        %v1892 = vunpack.c.l.b16 %v1853
        %v1893 = vunpack.c.l.b16 %v1854
        %v1894 = vunpack.c.l.b16 %v1855
        %v1895 = vunpack.c.l.b16 %v1856
        %v1896 = vunpack.c.l.b16 %v1857
        %v1897 = vunpack.c.l.b16 %v1858
        %v1898 = vunpack.c.l.b16 %v1859
        %v1899 = vunpack.c.l.b16 %v1860
        %v1900 = vpack.c.b16 %v1885, %v1884
        %v1901 = vpack.c.b16 %v1887, %v1886
        %v1902 = vpack.c.b16 %v1889, %v1888
        %v1903 = vpack.c.b16 %v1891, %v1890
        %v1904 = vpack.c.b16 %v1893, %v1892
        %v1905 = vpack.c.b16 %v1895, %v1894
        %v1906 = vpack.c.b16 %v1897, %v1896
        %v1907 = vpack.c.b16 %v1899, %v1898
        %1916 = vmatprep.subr.bf16.mxu0 0
        %1917 = vmatpush1.bf16.msra.mxu0 %v1907
        %1918 = vmatprep.subr.bf16.mxu0 0
        %1919 = vmatpush1.bf16.msra.mxu0 %v1906
        %1920 = vmatprep.subr.bf16.mxu0 0
        %1921 = vmatpush1.bf16.msra.mxu0 %v1905
        %1922 = vmatprep.subr.bf16.mxu0 0
        %1923 = vmatpush1.bf16.msra.mxu0 %v1904
        %1924 = vmatprep.subr.bf16.mxu0 0
        %1925 = vmatpush1.bf16.msra.mxu0 %v1903
        %1926 = vmatprep.subr.bf16.mxu0 0
        %1927 = vmatpush1.bf16.msra.mxu0 %v1902
        %1928 = vmatprep.subr.bf16.mxu0 0
        %1929 = vmatpush1.bf16.msra.mxu0 %v1901
        %1930 = vmatprep.subr.bf16.mxu0 0
        %1931 = vmatpush1.bf16.msra.mxu0 %v1900
        %1932 = vmatprep.subr.bf16.mxu0 0
        %1933 = vmatpush2.bf16.msra.mxu0 0
        %1934 = vmatprep.subr.bf16.mxu0 0
        %1935 = vmatpush2.bf16.msra.mxu0 0
        %1936 = vmatprep.subr.bf16.mxu0 0
        %1937 = vmatpush2.bf16.msra.mxu0 0
        %1938 = vmatprep.subr.bf16.mxu0 0
        %1939 = vmatpush2.bf16.msra.mxu0 0
        %1940 = vmatprep.subr.bf16.mxu0 0
        %1941 = vmatpush2.bf16.msra.mxu0 0
        %1942 = vmatprep.subr.bf16.mxu0 0
        %1943 = vmatpush2.bf16.msra.mxu0 0
        %1944 = vmatprep.subr.bf16.mxu0 0
        %1945 = vmatpush2.bf16.msra.mxu0 0
        %1946 = vmatprep.subr.bf16.mxu0 0
        %1947 = vmatpush2.bf16.msra.mxu0 0
        %1948 = vmatprep.mubr.bf16.mxu0 0
        %1949 = vmatmul.mubr.bf16.gmra.mxu0 %v1844
        %v1950 = vpop.f32.mrf.mxu0
        %v1951 = vadd.f32 %v1866, %v1950
        %v1952 = vpop.f32.mrf.mxu0
        %v1953 = vpop.f32.mrf.mxu0
        %v1954 = vpop.f32.mrf.mxu0
        %1955 = vdwg.mxu0
        %v1956 = vadd.f32 %v1730, %v1951
        %v1957 = vld [vmem:[%s812] sm:$0x1]
        %v1958 = vld [vmem:[%s815] sm:$0x1]
        %1959 = vadd.xlane.f32.xlu0 %v1956
        %v1960 = vpop.xlane.xlu0 %1959
        %v1961 = vmul.f32 %v1960, 0.03125
        %v1962 = vsub.f32 %v1956, %v1961
        %v1963 = vsel %vm826, %v1962, 0.0
        %v1964 = vmul.f32 %v1963, %v1963
        %1965 = vadd.xlane.f32.xlu0 %v1964
        %v1966 = vpop.xlane.xlu0 %1965
        %v1967 = vmul.f32 %v1966, 0.03125
        %v1968 = vadd.f32 %v1967, 1e-05
        %v1969 = vrsqrt.pop %v1968
        %v1970 = vmul.f32 %v1963, %v1969
        %v1972 = vlaneseq
        %v1973 = vshrl.u32 %v1972, 7
        %v1974 = vsub.s32 0, %v1973
        %v1975 = vrot.slane %v1957, %v1974
        %v1977 = vmul.f32 %v1970, %v1975
        %v1979 = vlaneseq
        %v1980 = vshrl.u32 %v1979, 7
        %v1981 = vsub.s32 0, %v1980
        %v1982 = vrot.slane %v1958, %v1981
        %v1984 = vadd.f32 %v1977, %v1982
        %1985 = vst [vmem:[#allocation2] sm:$0xff] %v1984
        %1986 = vst [vmem:[%s751] sm:$0xff] %v1984
        %s1987 = sand.u32 %s493, 1
        %s1988 = scalar_lea.sflag [#allocation5], %s1987
        %s1989 = sand.u32 %s493, 1
        %s1990 = smul.addr %s1989, 8
        %s1991 = scalar_lea.vmem [#allocation4], %s1990
        // Predicated region
        $region93: #{tpu_custom_call.1} parent=87 // pred_check
          %p1992 = pneg %p503
        $region94: #{tpu_custom_call.1} parent=87 // pred_check_branch
          %1994 = sbr.rel (%p1992) target = $region96
        $region95: #{tpu_custom_call.1} parent=87 // pred_region
          %s1996 = ssub.s32 128, 128
          %1997 = vsyncadd %s1988, %s1996
          %s1998 = smul.addr %s35, 128
          %s1999 = scalar_lea.hbm %s17, %s1998
          %s2001 = sshll.u32 %s1991, 4
          %s2002 = int_to_ptr.vmem [resolvable:$true] %s2001
          %2004 = dma.vmem_to_hbm [thread:$0]  %s2002, 128, %s1999, %s1988
        $region96: #{tpu_custom_call.1} parent=87 // pred_fallthru
          _
      $region88: #{tpu_custom_call.1} parent=5 // pred_fallthru
        _
      %p2005 = scmp.le.s32.totalorder 2, %s26
      // Predicated region
      $region97: #{tpu_custom_call.1} parent=5 // pred_check
        %p2006 = pneg %p2005
      $region98: #{tpu_custom_call.1} parent=5 // pred_check_branch
        %2008 = sbr.rel (%p2006) target = $region100
      $region99: #{tpu_custom_call.1} parent=5 // pred_region
        %s2009 = ssub.s32 %s26, 2
        // Predicated region
        $region101: #{tpu_custom_call.1} parent=99 // pred_check
          %p2010 = pneg %p509
        $region102: #{tpu_custom_call.1} parent=99 // pred_check_branch
          %2012 = sbr.rel (%p2010) target = $region104
        $region103: #{tpu_custom_call.1} parent=99 // pred_region
          %s2013 = sand.u32 %s494, 1
          %s2014 = scalar_lea.sflag [#allocation5], %s2013
          %s2015 = sand.u32 %s494, 1
          %s2016 = smul.addr %s2015, 8
          %s2017 = scalar_lea.vmem [#allocation4], %s2016
          %2018 = dma.done %s2014, 128
        $region104: #{tpu_custom_call.1} parent=99 // pred_fallthru
          _
      $region100: #{tpu_custom_call.1} parent=5 // pred_fallthru
        _
    $region6: #{tpu_custom_call.1} parent=1 // loop_footer
      %s30 = sadd.s32 1, %s26
    $region7: #{tpu_custom_call.1} parent=1 // loop_footer_branch
      %25 = sbr.rel target = $region3
    $region8: #{tpu_custom_call.1} parent=1 // loop_exit
      _
    %2019 = vsyncpa [#allocation5], 1
    %s2020 = scalar_lea.sflag [#allocation5], 1
    %2021 = vsyncpa %s2020, 1

</llo_original>
